<compile_context>
chip_gen: v6e
topology: v6e:2x2x1
jax: 0.10.0
libtpu: 0.0.40
codegen_flags: <defaults>
</compile_context>

<pallas_src>
import numpy as np
import jax
import jax.numpy as jnp
from jax.experimental import pallas as pl
from jax.experimental.pallas import tpu as pltpu

NUM_QUBITS = 4
NUM_LAYER = 2
NUM_ANGLES = NUM_LAYER * (4 * NUM_QUBITS - 1)   # 30
DIM = 2 ** NUM_QUBITS                           # 16
INPUT_SIZE = 16                                 # synthetic vocab size
BATCH = 8


# --------------------- static gate plan + transcendental-arg map ---------------------

def _build_gate_plan():
    """Returns (plan, M):
       plan: list of (kind, wires, arg_offset) in application order.
       M:    [NUM_ANGLES, N_ARGS] f32 matrix s.t. args = angles @ M gives every
             trig argument: theta/2 for each gate, then phi, lam, phi+lam per U3."""
    cols = []
    plan = []

    def add_u3(ang, wire):
        p = len(cols)
        c = np.zeros(NUM_ANGLES, np.float32); c[ang] = 0.5; cols.append(c)        # theta/2
        c = np.zeros(NUM_ANGLES, np.float32); c[ang + 1] = 1.0; cols.append(c)    # phi
        c = np.zeros(NUM_ANGLES, np.float32); c[ang + 2] = 1.0; cols.append(c)    # lam
        c = np.zeros(NUM_ANGLES, np.float32); c[ang + 1] = 1.0; c[ang + 2] = 1.0  # phi+lam
        cols.append(c)
        plan.append(("u3", (wire,), p))

    for lay in range(NUM_LAYER):
        ang = lay * (4 * NUM_QUBITS - 1)
        for i in range(NUM_QUBITS - 1):
            p = len(cols)
            c = np.zeros(NUM_ANGLES, np.float32); c[ang] = 0.5; cols.append(c)    # theta/2
            plan.append(("rxx", (i, i + 1), p))
            ang += 1
            add_u3(ang, i)
            ang += 3
        add_u3(ang, NUM_QUBITS - 1)

    M = np.stack(cols, axis=1)   # [NUM_ANGLES, N_ARGS]
    return plan, M


GATE_PLAN, ARG_MAP = _build_gate_plan()
N_ARGS = ARG_MAP.shape[1]        # 38


def _mask_of(wires):
    m = 0
    for w in wires:
        m |= 1 << (NUM_QUBITS - 1 - w)   # wire 0 = MSB (torchquantum big-endian)
    return m


# ---------------------------------- kernel ----------------------------------

def rnn_kernel(x_ref, wm_ref, bm_ref, sr_ref, si_ref, o_ref):
    B = sr_ref.shape[0]

    # Fused front-end: args = one_hot @ (W^T @ M) + (b @ M)   (single MXU dot)
    args = jnp.dot(x_ref[...], wm_ref[...],
                   preferred_element_type=jnp.float32) + bm_ref[...]   # [B, N_ARGS]
    # Batch every transcendental argument, then 2 wide EUP calls total.
    cos_a = jnp.cos(args)
    sin_a = jnp.sin(args)

    def col(arr, k):                     # [B, 1] per-batch scalar column
        return arr[:, k:k + 1]

    # Hoist constants: 7 distinct flip-permutation matrices + 4 bit masks,
    # each built exactly once (gate loop is unrolled at trace time, values reused).
    row = jax.lax.broadcasted_iota(jnp.int32, (DIM, DIM), 0)
    clm = jax.lax.broadcasted_iota(jnp.int32, (DIM, DIM), 1)
    lane = jax.lax.broadcasted_iota(jnp.int32, (1, DIM), 1)
    perm = {}
    bitm = {}
    for kind, wires, _ in GATE_PLAN:
        m = _mask_of(wires)
        if m not in perm:
            perm[m] = (clm == (row ^ m)).astype(jnp.float32)         # [DIM, DIM]
        if kind == "u3":
            w = wires[0]
            if w not in bitm:
                bitm[w] = ((lane >> (NUM_QUBITS - 1 - w)) & 1) == 1  # [1, DIM] bool

    # ---- coefficient pre-pass (independent of the state; off the serial chain) ----
    # For each gate, precompute the per-lane coefficients of
    #   new_s = A * s + Bc * s_flipped   (complex), split into real/imag parts.
    gates = []
    for kind, wires, p in GATE_PLAN:
        mask = _mask_of(wires)
        if kind == "rxx":
            # RXX(theta) = cos(t/2) I - i sin(t/2) X(x)X  (partner: both bits flipped)
            gates.append(("rxx", mask, (col(cos_a, p), col(sin_a, p))))
        else:
            # U3 = [[cos(t/2),           -e^{i lam} sin(t/2)],
            #       [e^{i phi} sin(t/2),  e^{i(phi+lam)} cos(t/2)]]
            ct, st = col(cos_a, p), col(sin_a, p)            # cos/sin(theta/2)
            cp, sp = col(cos_a, p + 1), col(sin_a, p + 1)    # cos/sin(phi)
            cl, sl = col(cos_a, p + 2), col(sin_a, p + 2)    # cos/sin(lam)
            cpl, spl = col(cos_a, p + 3), col(sin_a, p + 3)  # cos/sin(phi+lam)
            bit = bitm[wires[0]]
            # A = coefficient on the un-flipped amplitude, Bc = on the flipped one:
            #   bit==0: A=u00=(ct,0),            Bc=u01=(-cl*st, -sl*st)
            #   bit==1: A=u11=(cpl*ct, spl*ct),  Bc=u10=( cp*st,  sp*st)
            a_r = jnp.where(bit, cpl * ct, ct)
            a_i = jnp.where(bit, spl * ct, jnp.zeros_like(ct))
            b_r = jnp.where(bit, cp * st, -cl * st)
            b_i = jnp.where(bit, sp * st, -sl * st)
            gates.append(("u3", mask, (a_r, a_i, b_r, b_i)))

    # ---- serial state-update chain: per gate, 1 fused flip matmul + VALU FMAs ----
    sr = sr_ref[...]
    si = si_ref[...]

    for kind, mask, cf in gates:
        # Fused real/imag permutation: one 16x16 dot on the stacked [2B, DIM] state.
        cat = jnp.concatenate([sr, si], axis=0)
        f = jnp.dot(cat, perm[mask], preferred_element_type=jnp.float32)
        fr, fi = f[:B, :], f[B:, :]
        if kind == "rxx":
            c, s = cf
            sr, si = c * sr + s * fi, c * si - s * fr
        else:
            a_r, a_i, b_r, b_i = cf
            nr = a_r * sr - a_i * si + b_r * fr - b_i * fi
            ni = a_r * si + a_i * sr + b_r * fi + b_i * fr
            sr, si = nr, ni

    # Single merged store: real half on top, imag half below.
    o_ref[...] = jnp.concatenate([sr, si], axis=0)


# --------------------------------- wrapper ---------------------------------

def rnn_quantum_forward(tokens, W, b, state_r, state_i):
    """tokens: int32 [B]; W: [num_angles, input_size]; b: [num_angles];
    state_r/state_i: [B, 16]. Returns final statevector (real, imag) [B, 16]."""
    x = jax.nn.one_hot(tokens, INPUT_SIZE, dtype=jnp.float32)   # glue
    m = jnp.asarray(ARG_MAP)                                    # [num_angles, N_ARGS]
    # Fold the Linear weights into the static argument map (constant folding of
    # affine maps): args = x @ (W^T @ M) + (b @ M).
    wm = (W.T @ m).astype(jnp.float32)                          # [input_size, N_ARGS]
    bm = (b @ m).reshape(1, N_ARGS).astype(jnp.float32)         # [1, N_ARGS]
    B = tokens.shape[0]
    vmem = pl.BlockSpec(memory_space=pltpu.MemorySpace.VMEM)
    out = pl.pallas_call(
        rnn_kernel,
        out_shape=jax.ShapeDtypeStruct((2 * B, DIM), jnp.float32),
        in_specs=[vmem, vmem, vmem, vmem, vmem],
        out_specs=vmem,
    )(x, wm, bm, state_r, state_i)
    return out[:B], out[B:]


# ----------------------- pure-JAX reference (complex64) -----------------------

def reference_forward(tokens, W, b, state_r, state_i):
    x = jax.nn.one_hot(tokens, INPUT_SIZE, dtype=jnp.float32)
    angles = x @ W.T + b[None, :]
    state = (state_r + 1j * state_i).astype(jnp.complex64)
    state = state.reshape((state.shape[0],) + (2,) * NUM_QUBITS)

    def apply_1q(state, U, w):
        s = jnp.moveaxis(state, w + 1, 1)
        shp = s.shape
        s = s.reshape(s.shape[0], 2, -1)
        s = jnp.einsum('bij,bjk->bik', U, s)
        return jnp.moveaxis(s.reshape(shp), 1, w + 1)

    def apply_2q(state, U, w0, w1):
        s = jnp.moveaxis(state, (w0 + 1, w1 + 1), (1, 2))
        shp = s.shape
        s = s.reshape(s.shape[0], 4, -1)
        s = jnp.einsum('bij,bjk->bik', U, s)
        return jnp.moveaxis(s.reshape(shp), (1, 2), (w0 + 1, w1 + 1))

    def rxx_mat(theta):
        c = jnp.cos(theta / 2).astype(jnp.complex64)
        s = jnp.sin(theta / 2).astype(jnp.complex64)
        z = jnp.zeros_like(c)
        js = -1j * s
        return jnp.stack([jnp.stack([c, z, z, js], -1),
                          jnp.stack([z, c, js, z], -1),
                          jnp.stack([z, js, c, z], -1),
                          jnp.stack([js, z, z, c], -1)], -2)

    def u3_mat(theta, phi, lam):
        ct = jnp.cos(theta / 2).astype(jnp.complex64)
        st = jnp.sin(theta / 2).astype(jnp.complex64)
        el = jnp.exp(1j * lam.astype(jnp.complex64))
        ep = jnp.exp(1j * phi.astype(jnp.complex64))
        return jnp.stack([jnp.stack([ct, -el * st], -1),
                          jnp.stack([ep * st, ep * el * ct], -1)], -2)

    for lay in range(NUM_LAYER):
        a = angles[:, lay * (4 * NUM_QUBITS - 1):(lay + 1) * (4 * NUM_QUBITS - 1)]
        ang = 0
        for i in range(NUM_QUBITS - 1):
            state = apply_2q(state, rxx_mat(a[:, ang]), i, i + 1)
            ang += 1
            state = apply_1q(state, u3_mat(a[:, ang], a[:, ang + 1], a[:, ang + 2]), i)
            ang += 3
        state = apply_1q(state, u3_mat(a[:, ang], a[:, ang + 1], a[:, ang + 2]),
                         NUM_QUBITS - 1)
    state = state.reshape(state.shape[0], DIM)
    return jnp.real(state), jnp.imag(state)


# ----------------------------------- main -----------------------------------

if __name__ == "__main__":
    key = jax.random.PRNGKey(0)
    k1, k2, k3 = jax.random.split(key, 3)

    # Deterministic Linear(input_size -> num_angles) params (torch-style uniform init).
    bound = 1.0 / np.sqrt(INPUT_SIZE)
    W = jax.random.uniform(k1, (NUM_ANGLES, INPUT_SIZE), jnp.float32, -bound, bound)
    b = jax.random.uniform(k2, (NUM_ANGLES,), jnp.float32, -bound, bound)

    # Integer token inputs (the module one-hots them itself).
    tokens = jax.random.randint(k3, (BATCH,), 0, INPUT_SIZE, dtype=jnp.int32)

    # Quantum device initial state |0000> for every batch element.
    state_r = jnp.zeros((BATCH, DIM), jnp.float32).at[:, 0].set(1.0)
    state_i = jnp.zeros((BATCH, DIM), jnp.float32)

    out_r, out_i = rnn_quantum_forward(tokens, W, b, state_r, state_i)
    out_r, out_i = jax.block_until_ready((out_r, out_i))

    ref_r, ref_i = reference_forward(tokens, W, b, state_r, state_i)
    np.testing.assert_allclose(np.asarray(out_r), np.asarray(ref_r), rtol=1e-3, atol=2e-4)
    np.testing.assert_allclose(np.asarray(out_i), np.asarray(ref_i), rtol=1e-3, atol=2e-4)

    print("KERNEL_OK")
</pallas_src>

<mosaic_0001>
module attributes {stable_mosaic.version = 11 : i64} {
  func.func @rnn_kernel(%arg0: memref<8x16xf32, #tpu.memory_space<vmem>>, %arg1: memref<16x38xf32, #tpu.memory_space<vmem>>, %arg2: memref<1x38xf32, #tpu.memory_space<vmem>>, %arg3: memref<8x16xf32, #tpu.memory_space<vmem>>, %arg4: memref<8x16xf32, #tpu.memory_space<vmem>>, %arg5: memref<16x16xf32, #tpu.memory_space<vmem>>) attributes {dimension_semantics = [], scalar_prefetch = 0 : i64, scratch_operands = 0 : i64, tpu.core_type = #tpu.core_type<tc>} {
    %c0 = arith.constant 0 : index
    %c0_0 = arith.constant 0 : index
    %0 = vector.load %arg0[%c0, %c0_0] : memref<8x16xf32, #tpu.memory_space<vmem>>, vector<8x16xf32>
    %c0_1 = arith.constant 0 : index
    %c0_2 = arith.constant 0 : index
    %1 = vector.load %arg1[%c0_1, %c0_2] : memref<16x38xf32, #tpu.memory_space<vmem>>, vector<16x38xf32>
    %cst = arith.constant dense<0.000000e+00> : vector<8x38xf32>
    %2 = tpu.matmul %0, %1, %cst {dimension_numbers = #tpu.dot_dimension_numbers<[1], [0], [0], [1], [0, 0, 1, 1], [], []>} : vector<8x16xf32>, vector<16x38xf32>, vector<8x38xf32> -> vector<8x38xf32>
    %c0_3 = arith.constant 0 : index
    %c0_4 = arith.constant 0 : index
    %3 = vector.load %arg2[%c0_3, %c0_4] : memref<1x38xf32, #tpu.memory_space<vmem>>, vector<1x38xf32>
    %4 = vector.broadcast %3 : vector<1x38xf32> to vector<8x38xf32>
    %5 = arith.addf %2, %4 : vector<8x38xf32>
    %6 = math.cos %5 : vector<8x38xf32>
    %7 = math.sin %5 : vector<8x38xf32>
    %8 = tpu.iota {dimensions = array<i32: 0>} : vector<16x16xi32>
    %9 = tpu.iota {dimensions = array<i32: 1>} : vector<16x16xi32>
    %10 = tpu.iota {dimensions = array<i32: 1>} : vector<1x16xi32>
    %c12_i32 = arith.constant 12 : i32
    %11 = vector.broadcast %c12_i32 : i32 to vector<16x16xi32>
    %12 = arith.xori %8, %11 : vector<16x16xi32>
    %13 = arith.cmpi eq, %9, %12 : vector<16x16xi32>
    %14 = arith.extui %13 : vector<16x16xi1> to vector<16x16xi32>
    %15 = arith.sitofp %14 : vector<16x16xi32> to vector<16x16xf32>
    %c8_i32 = arith.constant 8 : i32
    %16 = vector.broadcast %c8_i32 : i32 to vector<16x16xi32>
    %17 = arith.xori %8, %16 : vector<16x16xi32>
    %18 = arith.cmpi eq, %9, %17 : vector<16x16xi32>
    %19 = arith.extui %18 : vector<16x16xi1> to vector<16x16xi32>
    %20 = arith.sitofp %19 : vector<16x16xi32> to vector<16x16xf32>
    %c3_i32 = arith.constant 3 : i32
    %21 = vector.broadcast %c3_i32 : i32 to vector<1x16xi32>
    %22 = arith.shrsi %10, %21 : vector<1x16xi32>
    %c1_i32 = arith.constant 1 : i32
    %23 = vector.broadcast %c1_i32 : i32 to vector<1x16xi32>
    %24 = arith.andi %22, %23 : vector<1x16xi32>
    %c1_i32_5 = arith.constant 1 : i32
    %25 = vector.broadcast %c1_i32_5 : i32 to vector<1x16xi32>
    %26 = arith.cmpi eq, %24, %25 : vector<1x16xi32>
    %c6_i32 = arith.constant 6 : i32
    %27 = vector.broadcast %c6_i32 : i32 to vector<16x16xi32>
    %28 = arith.xori %8, %27 : vector<16x16xi32>
    %29 = arith.cmpi eq, %9, %28 : vector<16x16xi32>
    %30 = arith.extui %29 : vector<16x16xi1> to vector<16x16xi32>
    %31 = arith.sitofp %30 : vector<16x16xi32> to vector<16x16xf32>
    %c4_i32 = arith.constant 4 : i32
    %32 = vector.broadcast %c4_i32 : i32 to vector<16x16xi32>
    %33 = arith.xori %8, %32 : vector<16x16xi32>
    %34 = arith.cmpi eq, %9, %33 : vector<16x16xi32>
    %35 = arith.extui %34 : vector<16x16xi1> to vector<16x16xi32>
    %36 = arith.sitofp %35 : vector<16x16xi32> to vector<16x16xf32>
    %c2_i32 = arith.constant 2 : i32
    %37 = vector.broadcast %c2_i32 : i32 to vector<1x16xi32>
    %38 = arith.shrsi %10, %37 : vector<1x16xi32>
    %c1_i32_6 = arith.constant 1 : i32
    %39 = vector.broadcast %c1_i32_6 : i32 to vector<1x16xi32>
    %40 = arith.andi %38, %39 : vector<1x16xi32>
    %c1_i32_7 = arith.constant 1 : i32
    %41 = vector.broadcast %c1_i32_7 : i32 to vector<1x16xi32>
    %42 = arith.cmpi eq, %40, %41 : vector<1x16xi32>
    %c3_i32_8 = arith.constant 3 : i32
    %43 = vector.broadcast %c3_i32_8 : i32 to vector<16x16xi32>
    %44 = arith.xori %8, %43 : vector<16x16xi32>
    %45 = arith.cmpi eq, %9, %44 : vector<16x16xi32>
    %46 = arith.extui %45 : vector<16x16xi1> to vector<16x16xi32>
    %47 = arith.sitofp %46 : vector<16x16xi32> to vector<16x16xf32>
    %c2_i32_9 = arith.constant 2 : i32
    %48 = vector.broadcast %c2_i32_9 : i32 to vector<16x16xi32>
    %49 = arith.xori %8, %48 : vector<16x16xi32>
    %50 = arith.cmpi eq, %9, %49 : vector<16x16xi32>
    %51 = arith.extui %50 : vector<16x16xi1> to vector<16x16xi32>
    %52 = arith.sitofp %51 : vector<16x16xi32> to vector<16x16xf32>
    %c1_i32_10 = arith.constant 1 : i32
    %53 = vector.broadcast %c1_i32_10 : i32 to vector<1x16xi32>
    %54 = arith.shrsi %10, %53 : vector<1x16xi32>
    %c1_i32_11 = arith.constant 1 : i32
    %55 = vector.broadcast %c1_i32_11 : i32 to vector<1x16xi32>
    %56 = arith.andi %54, %55 : vector<1x16xi32>
    %c1_i32_12 = arith.constant 1 : i32
    %57 = vector.broadcast %c1_i32_12 : i32 to vector<1x16xi32>
    %58 = arith.cmpi eq, %56, %57 : vector<1x16xi32>
    %c1_i32_13 = arith.constant 1 : i32
    %59 = vector.broadcast %c1_i32_13 : i32 to vector<16x16xi32>
    %60 = arith.xori %8, %59 : vector<16x16xi32>
    %61 = arith.cmpi eq, %9, %60 : vector<16x16xi32>
    %62 = arith.extui %61 : vector<16x16xi1> to vector<16x16xi32>
    %63 = arith.sitofp %62 : vector<16x16xi32> to vector<16x16xf32>
    %c0_i32 = arith.constant 0 : i32
    %64 = vector.broadcast %c0_i32 : i32 to vector<1x16xi32>
    %65 = arith.shrsi %10, %64 : vector<1x16xi32>
    %c1_i32_14 = arith.constant 1 : i32
    %66 = vector.broadcast %c1_i32_14 : i32 to vector<1x16xi32>
    %67 = arith.andi %65, %66 : vector<1x16xi32>
    %c1_i32_15 = arith.constant 1 : i32
    %68 = vector.broadcast %c1_i32_15 : i32 to vector<1x16xi32>
    %69 = arith.cmpi eq, %67, %68 : vector<1x16xi32>
    %70 = vector.extract_strided_slice %6 {offsets = [0, 0], sizes = [8, 1], strides = [1, 1]} : vector<8x38xf32> to vector<8x1xf32>
    %71 = vector.extract_strided_slice %7 {offsets = [0, 0], sizes = [8, 1], strides = [1, 1]} : vector<8x38xf32> to vector<8x1xf32>
    %72 = vector.extract_strided_slice %6 {offsets = [0, 1], sizes = [8, 1], strides = [1, 1]} : vector<8x38xf32> to vector<8x1xf32>
    %73 = vector.extract_strided_slice %7 {offsets = [0, 1], sizes = [8, 1], strides = [1, 1]} : vector<8x38xf32> to vector<8x1xf32>
    %74 = vector.extract_strided_slice %6 {offsets = [0, 2], sizes = [8, 1], strides = [1, 1]} : vector<8x38xf32> to vector<8x1xf32>
    %75 = vector.extract_strided_slice %7 {offsets = [0, 2], sizes = [8, 1], strides = [1, 1]} : vector<8x38xf32> to vector<8x1xf32>
    %76 = vector.extract_strided_slice %6 {offsets = [0, 3], sizes = [8, 1], strides = [1, 1]} : vector<8x38xf32> to vector<8x1xf32>
    %77 = vector.extract_strided_slice %7 {offsets = [0, 3], sizes = [8, 1], strides = [1, 1]} : vector<8x38xf32> to vector<8x1xf32>
    %78 = vector.extract_strided_slice %6 {offsets = [0, 4], sizes = [8, 1], strides = [1, 1]} : vector<8x38xf32> to vector<8x1xf32>
    %79 = vector.extract_strided_slice %7 {offsets = [0, 4], sizes = [8, 1], strides = [1, 1]} : vector<8x38xf32> to vector<8x1xf32>
    %80 = arith.mulf %78, %72 : vector<8x1xf32>
    %81 = vector.shape_cast %26 : vector<1x16xi1> to vector<1x16xi1>
    %82 = vector.broadcast %81 : vector<1x16xi1> to vector<8x16xi1>
    %83 = vector.shape_cast %80 : vector<8x1xf32> to vector<8x1xf32>
    %84 = vector.broadcast %83 : vector<8x1xf32> to vector<8x16xf32>
    %85 = vector.shape_cast %72 : vector<8x1xf32> to vector<8x1xf32>
    %86 = vector.broadcast %85 : vector<8x1xf32> to vector<8x16xf32>
    %87 = arith.select %82, %84, %86 : vector<8x16xi1>, vector<8x16xf32>
    %88 = arith.mulf %79, %72 : vector<8x1xf32>
    %cst_16 = arith.constant 0.000000e+00 : f32
    %89 = vector.broadcast %cst_16 : f32 to vector<8x1xf32>
    %90 = vector.shape_cast %26 : vector<1x16xi1> to vector<1x16xi1>
    %91 = vector.broadcast %90 : vector<1x16xi1> to vector<8x16xi1>
    %92 = vector.shape_cast %88 : vector<8x1xf32> to vector<8x1xf32>
    %93 = vector.broadcast %92 : vector<8x1xf32> to vector<8x16xf32>
    %94 = vector.shape_cast %89 : vector<8x1xf32> to vector<8x1xf32>
    %95 = vector.broadcast %94 : vector<8x1xf32> to vector<8x16xf32>
    %96 = arith.select %91, %93, %95 : vector<8x16xi1>, vector<8x16xf32>
    %97 = arith.mulf %74, %73 : vector<8x1xf32>
    %cst_17 = arith.constant 0.000000e+00 : f32
    %98 = vector.broadcast %cst_17 : f32 to vector<8x1xf32>
    %99 = arith.subf %98, %76 : vector<8x1xf32>
    %100 = arith.mulf %99, %73 : vector<8x1xf32>
    %101 = vector.shape_cast %26 : vector<1x16xi1> to vector<1x16xi1>
    %102 = vector.broadcast %101 : vector<1x16xi1> to vector<8x16xi1>
    %103 = vector.shape_cast %97 : vector<8x1xf32> to vector<8x1xf32>
    %104 = vector.broadcast %103 : vector<8x1xf32> to vector<8x16xf32>
    %105 = vector.shape_cast %100 : vector<8x1xf32> to vector<8x1xf32>
    %106 = vector.broadcast %105 : vector<8x1xf32> to vector<8x16xf32>
    %107 = arith.select %102, %104, %106 : vector<8x16xi1>, vector<8x16xf32>
    %108 = arith.mulf %75, %73 : vector<8x1xf32>
    %cst_18 = arith.constant 0.000000e+00 : f32
    %109 = vector.broadcast %cst_18 : f32 to vector<8x1xf32>
    %110 = arith.subf %109, %77 : vector<8x1xf32>
    %111 = arith.mulf %110, %73 : vector<8x1xf32>
    %112 = vector.shape_cast %26 : vector<1x16xi1> to vector<1x16xi1>
    %113 = vector.broadcast %112 : vector<1x16xi1> to vector<8x16xi1>
    %114 = vector.shape_cast %108 : vector<8x1xf32> to vector<8x1xf32>
    %115 = vector.broadcast %114 : vector<8x1xf32> to vector<8x16xf32>
    %116 = vector.shape_cast %111 : vector<8x1xf32> to vector<8x1xf32>
    %117 = vector.broadcast %116 : vector<8x1xf32> to vector<8x16xf32>
    %118 = arith.select %113, %115, %117 : vector<8x16xi1>, vector<8x16xf32>
    %119 = vector.extract_strided_slice %6 {offsets = [0, 5], sizes = [8, 1], strides = [1, 1]} : vector<8x38xf32> to vector<8x1xf32>
    %120 = vector.extract_strided_slice %7 {offsets = [0, 5], sizes = [8, 1], strides = [1, 1]} : vector<8x38xf32> to vector<8x1xf32>
    %121 = vector.extract_strided_slice %6 {offsets = [0, 6], sizes = [8, 1], strides = [1, 1]} : vector<8x38xf32> to vector<8x1xf32>
    %122 = vector.extract_strided_slice %7 {offsets = [0, 6], sizes = [8, 1], strides = [1, 1]} : vector<8x38xf32> to vector<8x1xf32>
    %123 = vector.extract_strided_slice %6 {offsets = [0, 7], sizes = [8, 1], strides = [1, 1]} : vector<8x38xf32> to vector<8x1xf32>
    %124 = vector.extract_strided_slice %7 {offsets = [0, 7], sizes = [8, 1], strides = [1, 1]} : vector<8x38xf32> to vector<8x1xf32>
    %125 = vector.extract_strided_slice %6 {offsets = [0, 8], sizes = [8, 1], strides = [1, 1]} : vector<8x38xf32> to vector<8x1xf32>
    %126 = vector.extract_strided_slice %7 {offsets = [0, 8], sizes = [8, 1], strides = [1, 1]} : vector<8x38xf32> to vector<8x1xf32>
    %127 = vector.extract_strided_slice %6 {offsets = [0, 9], sizes = [8, 1], strides = [1, 1]} : vector<8x38xf32> to vector<8x1xf32>
    %128 = vector.extract_strided_slice %7 {offsets = [0, 9], sizes = [8, 1], strides = [1, 1]} : vector<8x38xf32> to vector<8x1xf32>
    %129 = arith.mulf %127, %121 : vector<8x1xf32>
    %130 = vector.shape_cast %42 : vector<1x16xi1> to vector<1x16xi1>
    %131 = vector.broadcast %130 : vector<1x16xi1> to vector<8x16xi1>
    %132 = vector.shape_cast %129 : vector<8x1xf32> to vector<8x1xf32>
    %133 = vector.broadcast %132 : vector<8x1xf32> to vector<8x16xf32>
    %134 = vector.shape_cast %121 : vector<8x1xf32> to vector<8x1xf32>
    %135 = vector.broadcast %134 : vector<8x1xf32> to vector<8x16xf32>
    %136 = arith.select %131, %133, %135 : vector<8x16xi1>, vector<8x16xf32>
    %137 = arith.mulf %128, %121 : vector<8x1xf32>
    %cst_19 = arith.constant 0.000000e+00 : f32
    %138 = vector.broadcast %cst_19 : f32 to vector<8x1xf32>
    %139 = vector.shape_cast %42 : vector<1x16xi1> to vector<1x16xi1>
    %140 = vector.broadcast %139 : vector<1x16xi1> to vector<8x16xi1>
    %141 = vector.shape_cast %137 : vector<8x1xf32> to vector<8x1xf32>
    %142 = vector.broadcast %141 : vector<8x1xf32> to vector<8x16xf32>
    %143 = vector.shape_cast %138 : vector<8x1xf32> to vector<8x1xf32>
    %144 = vector.broadcast %143 : vector<8x1xf32> to vector<8x16xf32>
    %145 = arith.select %140, %142, %144 : vector<8x16xi1>, vector<8x16xf32>
    %146 = arith.mulf %123, %122 : vector<8x1xf32>
    %cst_20 = arith.constant 0.000000e+00 : f32
    %147 = vector.broadcast %cst_20 : f32 to vector<8x1xf32>
    %148 = arith.subf %147, %125 : vector<8x1xf32>
    %149 = arith.mulf %148, %122 : vector<8x1xf32>
    %150 = vector.shape_cast %42 : vector<1x16xi1> to vector<1x16xi1>
    %151 = vector.broadcast %150 : vector<1x16xi1> to vector<8x16xi1>
    %152 = vector.shape_cast %146 : vector<8x1xf32> to vector<8x1xf32>
    %153 = vector.broadcast %152 : vector<8x1xf32> to vector<8x16xf32>
    %154 = vector.shape_cast %149 : vector<8x1xf32> to vector<8x1xf32>
    %155 = vector.broadcast %154 : vector<8x1xf32> to vector<8x16xf32>
    %156 = arith.select %151, %153, %155 : vector<8x16xi1>, vector<8x16xf32>
    %157 = arith.mulf %124, %122 : vector<8x1xf32>
    %cst_21 = arith.constant 0.000000e+00 : f32
    %158 = vector.broadcast %cst_21 : f32 to vector<8x1xf32>
    %159 = arith.subf %158, %126 : vector<8x1xf32>
    %160 = arith.mulf %159, %122 : vector<8x1xf32>
    %161 = vector.shape_cast %42 : vector<1x16xi1> to vector<1x16xi1>
    %162 = vector.broadcast %161 : vector<1x16xi1> to vector<8x16xi1>
    %163 = vector.shape_cast %157 : vector<8x1xf32> to vector<8x1xf32>
    %164 = vector.broadcast %163 : vector<8x1xf32> to vector<8x16xf32>
    %165 = vector.shape_cast %160 : vector<8x1xf32> to vector<8x1xf32>
    %166 = vector.broadcast %165 : vector<8x1xf32> to vector<8x16xf32>
    %167 = arith.select %162, %164, %166 : vector<8x16xi1>, vector<8x16xf32>
    %168 = vector.extract_strided_slice %6 {offsets = [0, 10], sizes = [8, 1], strides = [1, 1]} : vector<8x38xf32> to vector<8x1xf32>
    %169 = vector.extract_strided_slice %7 {offsets = [0, 10], sizes = [8, 1], strides = [1, 1]} : vector<8x38xf32> to vector<8x1xf32>
    %170 = vector.extract_strided_slice %6 {offsets = [0, 11], sizes = [8, 1], strides = [1, 1]} : vector<8x38xf32> to vector<8x1xf32>
    %171 = vector.extract_strided_slice %7 {offsets = [0, 11], sizes = [8, 1], strides = [1, 1]} : vector<8x38xf32> to vector<8x1xf32>
    %172 = vector.extract_strided_slice %6 {offsets = [0, 12], sizes = [8, 1], strides = [1, 1]} : vector<8x38xf32> to vector<8x1xf32>
    %173 = vector.extract_strided_slice %7 {offsets = [0, 12], sizes = [8, 1], strides = [1, 1]} : vector<8x38xf32> to vector<8x1xf32>
    %174 = vector.extract_strided_slice %6 {offsets = [0, 13], sizes = [8, 1], strides = [1, 1]} : vector<8x38xf32> to vector<8x1xf32>
    %175 = vector.extract_strided_slice %7 {offsets = [0, 13], sizes = [8, 1], strides = [1, 1]} : vector<8x38xf32> to vector<8x1xf32>
    %176 = vector.extract_strided_slice %6 {offsets = [0, 14], sizes = [8, 1], strides = [1, 1]} : vector<8x38xf32> to vector<8x1xf32>
    %177 = vector.extract_strided_slice %7 {offsets = [0, 14], sizes = [8, 1], strides = [1, 1]} : vector<8x38xf32> to vector<8x1xf32>
    %178 = arith.mulf %176, %170 : vector<8x1xf32>
    %179 = vector.shape_cast %58 : vector<1x16xi1> to vector<1x16xi1>
    %180 = vector.broadcast %179 : vector<1x16xi1> to vector<8x16xi1>
    %181 = vector.shape_cast %178 : vector<8x1xf32> to vector<8x1xf32>
    %182 = vector.broadcast %181 : vector<8x1xf32> to vector<8x16xf32>
    %183 = vector.shape_cast %170 : vector<8x1xf32> to vector<8x1xf32>
    %184 = vector.broadcast %183 : vector<8x1xf32> to vector<8x16xf32>
    %185 = arith.select %180, %182, %184 : vector<8x16xi1>, vector<8x16xf32>
    %186 = arith.mulf %177, %170 : vector<8x1xf32>
    %cst_22 = arith.constant 0.000000e+00 : f32
    %187 = vector.broadcast %cst_22 : f32 to vector<8x1xf32>
    %188 = vector.shape_cast %58 : vector<1x16xi1> to vector<1x16xi1>
    %189 = vector.broadcast %188 : vector<1x16xi1> to vector<8x16xi1>
    %190 = vector.shape_cast %186 : vector<8x1xf32> to vector<8x1xf32>
    %191 = vector.broadcast %190 : vector<8x1xf32> to vector<8x16xf32>
    %192 = vector.shape_cast %187 : vector<8x1xf32> to vector<8x1xf32>
    %193 = vector.broadcast %192 : vector<8x1xf32> to vector<8x16xf32>
    %194 = arith.select %189, %191, %193 : vector<8x16xi1>, vector<8x16xf32>
    %195 = arith.mulf %172, %171 : vector<8x1xf32>
    %cst_23 = arith.constant 0.000000e+00 : f32
    %196 = vector.broadcast %cst_23 : f32 to vector<8x1xf32>
    %197 = arith.subf %196, %174 : vector<8x1xf32>
    %198 = arith.mulf %197, %171 : vector<8x1xf32>
    %199 = vector.shape_cast %58 : vector<1x16xi1> to vector<1x16xi1>
    %200 = vector.broadcast %199 : vector<1x16xi1> to vector<8x16xi1>
    %201 = vector.shape_cast %195 : vector<8x1xf32> to vector<8x1xf32>
    %202 = vector.broadcast %201 : vector<8x1xf32> to vector<8x16xf32>
    %203 = vector.shape_cast %198 : vector<8x1xf32> to vector<8x1xf32>
    %204 = vector.broadcast %203 : vector<8x1xf32> to vector<8x16xf32>
    %205 = arith.select %200, %202, %204 : vector<8x16xi1>, vector<8x16xf32>
    %206 = arith.mulf %173, %171 : vector<8x1xf32>
    %cst_24 = arith.constant 0.000000e+00 : f32
    %207 = vector.broadcast %cst_24 : f32 to vector<8x1xf32>
    %208 = arith.subf %207, %175 : vector<8x1xf32>
    %209 = arith.mulf %208, %171 : vector<8x1xf32>
    %210 = vector.shape_cast %58 : vector<1x16xi1> to vector<1x16xi1>
    %211 = vector.broadcast %210 : vector<1x16xi1> to vector<8x16xi1>
    %212 = vector.shape_cast %206 : vector<8x1xf32> to vector<8x1xf32>
    %213 = vector.broadcast %212 : vector<8x1xf32> to vector<8x16xf32>
    %214 = vector.shape_cast %209 : vector<8x1xf32> to vector<8x1xf32>
    %215 = vector.broadcast %214 : vector<8x1xf32> to vector<8x16xf32>
    %216 = arith.select %211, %213, %215 : vector<8x16xi1>, vector<8x16xf32>
    %217 = vector.extract_strided_slice %6 {offsets = [0, 15], sizes = [8, 1], strides = [1, 1]} : vector<8x38xf32> to vector<8x1xf32>
    %218 = vector.extract_strided_slice %7 {offsets = [0, 15], sizes = [8, 1], strides = [1, 1]} : vector<8x38xf32> to vector<8x1xf32>
    %219 = vector.extract_strided_slice %6 {offsets = [0, 16], sizes = [8, 1], strides = [1, 1]} : vector<8x38xf32> to vector<8x1xf32>
    %220 = vector.extract_strided_slice %7 {offsets = [0, 16], sizes = [8, 1], strides = [1, 1]} : vector<8x38xf32> to vector<8x1xf32>
    %221 = vector.extract_strided_slice %6 {offsets = [0, 17], sizes = [8, 1], strides = [1, 1]} : vector<8x38xf32> to vector<8x1xf32>
    %222 = vector.extract_strided_slice %7 {offsets = [0, 17], sizes = [8, 1], strides = [1, 1]} : vector<8x38xf32> to vector<8x1xf32>
    %223 = vector.extract_strided_slice %6 {offsets = [0, 18], sizes = [8, 1], strides = [1, 1]} : vector<8x38xf32> to vector<8x1xf32>
    %224 = vector.extract_strided_slice %7 {offsets = [0, 18], sizes = [8, 1], strides = [1, 1]} : vector<8x38xf32> to vector<8x1xf32>
    %225 = arith.mulf %223, %217 : vector<8x1xf32>
    %226 = vector.shape_cast %69 : vector<1x16xi1> to vector<1x16xi1>
    %227 = vector.broadcast %226 : vector<1x16xi1> to vector<8x16xi1>
    %228 = vector.shape_cast %225 : vector<8x1xf32> to vector<8x1xf32>
    %229 = vector.broadcast %228 : vector<8x1xf32> to vector<8x16xf32>
    %230 = vector.shape_cast %217 : vector<8x1xf32> to vector<8x1xf32>
    %231 = vector.broadcast %230 : vector<8x1xf32> to vector<8x16xf32>
    %232 = arith.select %227, %229, %231 : vector<8x16xi1>, vector<8x16xf32>
    %233 = arith.mulf %224, %217 : vector<8x1xf32>
    %cst_25 = arith.constant 0.000000e+00 : f32
    %234 = vector.broadcast %cst_25 : f32 to vector<8x1xf32>
    %235 = vector.shape_cast %69 : vector<1x16xi1> to vector<1x16xi1>
    %236 = vector.broadcast %235 : vector<1x16xi1> to vector<8x16xi1>
    %237 = vector.shape_cast %233 : vector<8x1xf32> to vector<8x1xf32>
    %238 = vector.broadcast %237 : vector<8x1xf32> to vector<8x16xf32>
    %239 = vector.shape_cast %234 : vector<8x1xf32> to vector<8x1xf32>
    %240 = vector.broadcast %239 : vector<8x1xf32> to vector<8x16xf32>
    %241 = arith.select %236, %238, %240 : vector<8x16xi1>, vector<8x16xf32>
    %242 = arith.mulf %219, %218 : vector<8x1xf32>
    %cst_26 = arith.constant 0.000000e+00 : f32
    %243 = vector.broadcast %cst_26 : f32 to vector<8x1xf32>
    %244 = arith.subf %243, %221 : vector<8x1xf32>
    %245 = arith.mulf %244, %218 : vector<8x1xf32>
    %246 = vector.shape_cast %69 : vector<1x16xi1> to vector<1x16xi1>
    %247 = vector.broadcast %246 : vector<1x16xi1> to vector<8x16xi1>
    %248 = vector.shape_cast %242 : vector<8x1xf32> to vector<8x1xf32>
    %249 = vector.broadcast %248 : vector<8x1xf32> to vector<8x16xf32>
    %250 = vector.shape_cast %245 : vector<8x1xf32> to vector<8x1xf32>
    %251 = vector.broadcast %250 : vector<8x1xf32> to vector<8x16xf32>
    %252 = arith.select %247, %249, %251 : vector<8x16xi1>, vector<8x16xf32>
    %253 = arith.mulf %220, %218 : vector<8x1xf32>
    %cst_27 = arith.constant 0.000000e+00 : f32
    %254 = vector.broadcast %cst_27 : f32 to vector<8x1xf32>
    %255 = arith.subf %254, %222 : vector<8x1xf32>
    %256 = arith.mulf %255, %218 : vector<8x1xf32>
    %257 = vector.shape_cast %69 : vector<1x16xi1> to vector<1x16xi1>
    %258 = vector.broadcast %257 : vector<1x16xi1> to vector<8x16xi1>
    %259 = vector.shape_cast %253 : vector<8x1xf32> to vector<8x1xf32>
    %260 = vector.broadcast %259 : vector<8x1xf32> to vector<8x16xf32>
    %261 = vector.shape_cast %256 : vector<8x1xf32> to vector<8x1xf32>
    %262 = vector.broadcast %261 : vector<8x1xf32> to vector<8x16xf32>
    %263 = arith.select %258, %260, %262 : vector<8x16xi1>, vector<8x16xf32>
    %264 = vector.extract_strided_slice %6 {offsets = [0, 19], sizes = [8, 1], strides = [1, 1]} : vector<8x38xf32> to vector<8x1xf32>
    %265 = vector.extract_strided_slice %7 {offsets = [0, 19], sizes = [8, 1], strides = [1, 1]} : vector<8x38xf32> to vector<8x1xf32>
    %266 = vector.extract_strided_slice %6 {offsets = [0, 20], sizes = [8, 1], strides = [1, 1]} : vector<8x38xf32> to vector<8x1xf32>
    %267 = vector.extract_strided_slice %7 {offsets = [0, 20], sizes = [8, 1], strides = [1, 1]} : vector<8x38xf32> to vector<8x1xf32>
    %268 = vector.extract_strided_slice %6 {offsets = [0, 21], sizes = [8, 1], strides = [1, 1]} : vector<8x38xf32> to vector<8x1xf32>
    %269 = vector.extract_strided_slice %7 {offsets = [0, 21], sizes = [8, 1], strides = [1, 1]} : vector<8x38xf32> to vector<8x1xf32>
    %270 = vector.extract_strided_slice %6 {offsets = [0, 22], sizes = [8, 1], strides = [1, 1]} : vector<8x38xf32> to vector<8x1xf32>
    %271 = vector.extract_strided_slice %7 {offsets = [0, 22], sizes = [8, 1], strides = [1, 1]} : vector<8x38xf32> to vector<8x1xf32>
    %272 = vector.extract_strided_slice %6 {offsets = [0, 23], sizes = [8, 1], strides = [1, 1]} : vector<8x38xf32> to vector<8x1xf32>
    %273 = vector.extract_strided_slice %7 {offsets = [0, 23], sizes = [8, 1], strides = [1, 1]} : vector<8x38xf32> to vector<8x1xf32>
    %274 = arith.mulf %272, %266 : vector<8x1xf32>
    %275 = vector.shape_cast %26 : vector<1x16xi1> to vector<1x16xi1>
    %276 = vector.broadcast %275 : vector<1x16xi1> to vector<8x16xi1>
    %277 = vector.shape_cast %274 : vector<8x1xf32> to vector<8x1xf32>
    %278 = vector.broadcast %277 : vector<8x1xf32> to vector<8x16xf32>
    %279 = vector.shape_cast %266 : vector<8x1xf32> to vector<8x1xf32>
    %280 = vector.broadcast %279 : vector<8x1xf32> to vector<8x16xf32>
    %281 = arith.select %276, %278, %280 : vector<8x16xi1>, vector<8x16xf32>
    %282 = arith.mulf %273, %266 : vector<8x1xf32>
    %cst_28 = arith.constant 0.000000e+00 : f32
    %283 = vector.broadcast %cst_28 : f32 to vector<8x1xf32>
    %284 = vector.shape_cast %26 : vector<1x16xi1> to vector<1x16xi1>
    %285 = vector.broadcast %284 : vector<1x16xi1> to vector<8x16xi1>
    %286 = vector.shape_cast %282 : vector<8x1xf32> to vector<8x1xf32>
    %287 = vector.broadcast %286 : vector<8x1xf32> to vector<8x16xf32>
    %288 = vector.shape_cast %283 : vector<8x1xf32> to vector<8x1xf32>
    %289 = vector.broadcast %288 : vector<8x1xf32> to vector<8x16xf32>
    %290 = arith.select %285, %287, %289 : vector<8x16xi1>, vector<8x16xf32>
    %291 = arith.mulf %268, %267 : vector<8x1xf32>
    %cst_29 = arith.constant 0.000000e+00 : f32
    %292 = vector.broadcast %cst_29 : f32 to vector<8x1xf32>
    %293 = arith.subf %292, %270 : vector<8x1xf32>
    %294 = arith.mulf %293, %267 : vector<8x1xf32>
    %295 = vector.shape_cast %26 : vector<1x16xi1> to vector<1x16xi1>
    %296 = vector.broadcast %295 : vector<1x16xi1> to vector<8x16xi1>
    %297 = vector.shape_cast %291 : vector<8x1xf32> to vector<8x1xf32>
    %298 = vector.broadcast %297 : vector<8x1xf32> to vector<8x16xf32>
    %299 = vector.shape_cast %294 : vector<8x1xf32> to vector<8x1xf32>
    %300 = vector.broadcast %299 : vector<8x1xf32> to vector<8x16xf32>
    %301 = arith.select %296, %298, %300 : vector<8x16xi1>, vector<8x16xf32>
    %302 = arith.mulf %269, %267 : vector<8x1xf32>
    %cst_30 = arith.constant 0.000000e+00 : f32
    %303 = vector.broadcast %cst_30 : f32 to vector<8x1xf32>
    %304 = arith.subf %303, %271 : vector<8x1xf32>
    %305 = arith.mulf %304, %267 : vector<8x1xf32>
    %306 = vector.shape_cast %26 : vector<1x16xi1> to vector<1x16xi1>
    %307 = vector.broadcast %306 : vector<1x16xi1> to vector<8x16xi1>
    %308 = vector.shape_cast %302 : vector<8x1xf32> to vector<8x1xf32>
    %309 = vector.broadcast %308 : vector<8x1xf32> to vector<8x16xf32>
    %310 = vector.shape_cast %305 : vector<8x1xf32> to vector<8x1xf32>
    %311 = vector.broadcast %310 : vector<8x1xf32> to vector<8x16xf32>
    %312 = arith.select %307, %309, %311 : vector<8x16xi1>, vector<8x16xf32>
    %313 = vector.extract_strided_slice %6 {offsets = [0, 24], sizes = [8, 1], strides = [1, 1]} : vector<8x38xf32> to vector<8x1xf32>
    %314 = vector.extract_strided_slice %7 {offsets = [0, 24], sizes = [8, 1], strides = [1, 1]} : vector<8x38xf32> to vector<8x1xf32>
    %315 = vector.extract_strided_slice %6 {offsets = [0, 25], sizes = [8, 1], strides = [1, 1]} : vector<8x38xf32> to vector<8x1xf32>
    %316 = vector.extract_strided_slice %7 {offsets = [0, 25], sizes = [8, 1], strides = [1, 1]} : vector<8x38xf32> to vector<8x1xf32>
    %317 = vector.extract_strided_slice %6 {offsets = [0, 26], sizes = [8, 1], strides = [1, 1]} : vector<8x38xf32> to vector<8x1xf32>
    %318 = vector.extract_strided_slice %7 {offsets = [0, 26], sizes = [8, 1], strides = [1, 1]} : vector<8x38xf32> to vector<8x1xf32>
    %319 = vector.extract_strided_slice %6 {offsets = [0, 27], sizes = [8, 1], strides = [1, 1]} : vector<8x38xf32> to vector<8x1xf32>
    %320 = vector.extract_strided_slice %7 {offsets = [0, 27], sizes = [8, 1], strides = [1, 1]} : vector<8x38xf32> to vector<8x1xf32>
    %321 = vector.extract_strided_slice %6 {offsets = [0, 28], sizes = [8, 1], strides = [1, 1]} : vector<8x38xf32> to vector<8x1xf32>
    %322 = vector.extract_strided_slice %7 {offsets = [0, 28], sizes = [8, 1], strides = [1, 1]} : vector<8x38xf32> to vector<8x1xf32>
    %323 = arith.mulf %321, %315 : vector<8x1xf32>
    %324 = vector.shape_cast %42 : vector<1x16xi1> to vector<1x16xi1>
    %325 = vector.broadcast %324 : vector<1x16xi1> to vector<8x16xi1>
    %326 = vector.shape_cast %323 : vector<8x1xf32> to vector<8x1xf32>
    %327 = vector.broadcast %326 : vector<8x1xf32> to vector<8x16xf32>
    %328 = vector.shape_cast %315 : vector<8x1xf32> to vector<8x1xf32>
    %329 = vector.broadcast %328 : vector<8x1xf32> to vector<8x16xf32>
    %330 = arith.select %325, %327, %329 : vector<8x16xi1>, vector<8x16xf32>
    %331 = arith.mulf %322, %315 : vector<8x1xf32>
    %cst_31 = arith.constant 0.000000e+00 : f32
    %332 = vector.broadcast %cst_31 : f32 to vector<8x1xf32>
    %333 = vector.shape_cast %42 : vector<1x16xi1> to vector<1x16xi1>
    %334 = vector.broadcast %333 : vector<1x16xi1> to vector<8x16xi1>
    %335 = vector.shape_cast %331 : vector<8x1xf32> to vector<8x1xf32>
    %336 = vector.broadcast %335 : vector<8x1xf32> to vector<8x16xf32>
    %337 = vector.shape_cast %332 : vector<8x1xf32> to vector<8x1xf32>
    %338 = vector.broadcast %337 : vector<8x1xf32> to vector<8x16xf32>
    %339 = arith.select %334, %336, %338 : vector<8x16xi1>, vector<8x16xf32>
    %340 = arith.mulf %317, %316 : vector<8x1xf32>
    %cst_32 = arith.constant 0.000000e+00 : f32
    %341 = vector.broadcast %cst_32 : f32 to vector<8x1xf32>
    %342 = arith.subf %341, %319 : vector<8x1xf32>
    %343 = arith.mulf %342, %316 : vector<8x1xf32>
    %344 = vector.shape_cast %42 : vector<1x16xi1> to vector<1x16xi1>
    %345 = vector.broadcast %344 : vector<1x16xi1> to vector<8x16xi1>
    %346 = vector.shape_cast %340 : vector<8x1xf32> to vector<8x1xf32>
    %347 = vector.broadcast %346 : vector<8x1xf32> to vector<8x16xf32>
    %348 = vector.shape_cast %343 : vector<8x1xf32> to vector<8x1xf32>
    %349 = vector.broadcast %348 : vector<8x1xf32> to vector<8x16xf32>
    %350 = arith.select %345, %347, %349 : vector<8x16xi1>, vector<8x16xf32>
    %351 = arith.mulf %318, %316 : vector<8x1xf32>
    %cst_33 = arith.constant 0.000000e+00 : f32
    %352 = vector.broadcast %cst_33 : f32 to vector<8x1xf32>
    %353 = arith.subf %352, %320 : vector<8x1xf32>
    %354 = arith.mulf %353, %316 : vector<8x1xf32>
    %355 = vector.shape_cast %42 : vector<1x16xi1> to vector<1x16xi1>
    %356 = vector.broadcast %355 : vector<1x16xi1> to vector<8x16xi1>
    %357 = vector.shape_cast %351 : vector<8x1xf32> to vector<8x1xf32>
    %358 = vector.broadcast %357 : vector<8x1xf32> to vector<8x16xf32>
    %359 = vector.shape_cast %354 : vector<8x1xf32> to vector<8x1xf32>
    %360 = vector.broadcast %359 : vector<8x1xf32> to vector<8x16xf32>
    %361 = arith.select %356, %358, %360 : vector<8x16xi1>, vector<8x16xf32>
    %362 = vector.extract_strided_slice %6 {offsets = [0, 29], sizes = [8, 1], strides = [1, 1]} : vector<8x38xf32> to vector<8x1xf32>
    %363 = vector.extract_strided_slice %7 {offsets = [0, 29], sizes = [8, 1], strides = [1, 1]} : vector<8x38xf32> to vector<8x1xf32>
    %364 = vector.extract_strided_slice %6 {offsets = [0, 30], sizes = [8, 1], strides = [1, 1]} : vector<8x38xf32> to vector<8x1xf32>
    %365 = vector.extract_strided_slice %7 {offsets = [0, 30], sizes = [8, 1], strides = [1, 1]} : vector<8x38xf32> to vector<8x1xf32>
    %366 = vector.extract_strided_slice %6 {offsets = [0, 31], sizes = [8, 1], strides = [1, 1]} : vector<8x38xf32> to vector<8x1xf32>
    %367 = vector.extract_strided_slice %7 {offsets = [0, 31], sizes = [8, 1], strides = [1, 1]} : vector<8x38xf32> to vector<8x1xf32>
    %368 = vector.extract_strided_slice %6 {offsets = [0, 32], sizes = [8, 1], strides = [1, 1]} : vector<8x38xf32> to vector<8x1xf32>
    %369 = vector.extract_strided_slice %7 {offsets = [0, 32], sizes = [8, 1], strides = [1, 1]} : vector<8x38xf32> to vector<8x1xf32>
    %370 = vector.extract_strided_slice %6 {offsets = [0, 33], sizes = [8, 1], strides = [1, 1]} : vector<8x38xf32> to vector<8x1xf32>
    %371 = vector.extract_strided_slice %7 {offsets = [0, 33], sizes = [8, 1], strides = [1, 1]} : vector<8x38xf32> to vector<8x1xf32>
    %372 = arith.mulf %370, %364 : vector<8x1xf32>
    %373 = vector.shape_cast %58 : vector<1x16xi1> to vector<1x16xi1>
    %374 = vector.broadcast %373 : vector<1x16xi1> to vector<8x16xi1>
    %375 = vector.shape_cast %372 : vector<8x1xf32> to vector<8x1xf32>
    %376 = vector.broadcast %375 : vector<8x1xf32> to vector<8x16xf32>
    %377 = vector.shape_cast %364 : vector<8x1xf32> to vector<8x1xf32>
    %378 = vector.broadcast %377 : vector<8x1xf32> to vector<8x16xf32>
    %379 = arith.select %374, %376, %378 : vector<8x16xi1>, vector<8x16xf32>
    %380 = arith.mulf %371, %364 : vector<8x1xf32>
    %cst_34 = arith.constant 0.000000e+00 : f32
    %381 = vector.broadcast %cst_34 : f32 to vector<8x1xf32>
    %382 = vector.shape_cast %58 : vector<1x16xi1> to vector<1x16xi1>
    %383 = vector.broadcast %382 : vector<1x16xi1> to vector<8x16xi1>
    %384 = vector.shape_cast %380 : vector<8x1xf32> to vector<8x1xf32>
    %385 = vector.broadcast %384 : vector<8x1xf32> to vector<8x16xf32>
    %386 = vector.shape_cast %381 : vector<8x1xf32> to vector<8x1xf32>
    %387 = vector.broadcast %386 : vector<8x1xf32> to vector<8x16xf32>
    %388 = arith.select %383, %385, %387 : vector<8x16xi1>, vector<8x16xf32>
    %389 = arith.mulf %366, %365 : vector<8x1xf32>
    %cst_35 = arith.constant 0.000000e+00 : f32
    %390 = vector.broadcast %cst_35 : f32 to vector<8x1xf32>
    %391 = arith.subf %390, %368 : vector<8x1xf32>
    %392 = arith.mulf %391, %365 : vector<8x1xf32>
    %393 = vector.shape_cast %58 : vector<1x16xi1> to vector<1x16xi1>
    %394 = vector.broadcast %393 : vector<1x16xi1> to vector<8x16xi1>
    %395 = vector.shape_cast %389 : vector<8x1xf32> to vector<8x1xf32>
    %396 = vector.broadcast %395 : vector<8x1xf32> to vector<8x16xf32>
    %397 = vector.shape_cast %392 : vector<8x1xf32> to vector<8x1xf32>
    %398 = vector.broadcast %397 : vector<8x1xf32> to vector<8x16xf32>
    %399 = arith.select %394, %396, %398 : vector<8x16xi1>, vector<8x16xf32>
    %400 = arith.mulf %367, %365 : vector<8x1xf32>
    %cst_36 = arith.constant 0.000000e+00 : f32
    %401 = vector.broadcast %cst_36 : f32 to vector<8x1xf32>
    %402 = arith.subf %401, %369 : vector<8x1xf32>
    %403 = arith.mulf %402, %365 : vector<8x1xf32>
    %404 = vector.shape_cast %58 : vector<1x16xi1> to vector<1x16xi1>
    %405 = vector.broadcast %404 : vector<1x16xi1> to vector<8x16xi1>
    %406 = vector.shape_cast %400 : vector<8x1xf32> to vector<8x1xf32>
    %407 = vector.broadcast %406 : vector<8x1xf32> to vector<8x16xf32>
    %408 = vector.shape_cast %403 : vector<8x1xf32> to vector<8x1xf32>
    %409 = vector.broadcast %408 : vector<8x1xf32> to vector<8x16xf32>
    %410 = arith.select %405, %407, %409 : vector<8x16xi1>, vector<8x16xf32>
    %411 = vector.extract_strided_slice %6 {offsets = [0, 34], sizes = [8, 1], strides = [1, 1]} : vector<8x38xf32> to vector<8x1xf32>
    %412 = vector.extract_strided_slice %7 {offsets = [0, 34], sizes = [8, 1], strides = [1, 1]} : vector<8x38xf32> to vector<8x1xf32>
    %413 = vector.extract_strided_slice %6 {offsets = [0, 35], sizes = [8, 1], strides = [1, 1]} : vector<8x38xf32> to vector<8x1xf32>
    %414 = vector.extract_strided_slice %7 {offsets = [0, 35], sizes = [8, 1], strides = [1, 1]} : vector<8x38xf32> to vector<8x1xf32>
    %415 = vector.extract_strided_slice %6 {offsets = [0, 36], sizes = [8, 1], strides = [1, 1]} : vector<8x38xf32> to vector<8x1xf32>
    %416 = vector.extract_strided_slice %7 {offsets = [0, 36], sizes = [8, 1], strides = [1, 1]} : vector<8x38xf32> to vector<8x1xf32>
    %417 = vector.extract_strided_slice %6 {offsets = [0, 37], sizes = [8, 1], strides = [1, 1]} : vector<8x38xf32> to vector<8x1xf32>
    %418 = vector.extract_strided_slice %7 {offsets = [0, 37], sizes = [8, 1], strides = [1, 1]} : vector<8x38xf32> to vector<8x1xf32>
    %419 = arith.mulf %417, %411 : vector<8x1xf32>
    %420 = vector.shape_cast %69 : vector<1x16xi1> to vector<1x16xi1>
    %421 = vector.broadcast %420 : vector<1x16xi1> to vector<8x16xi1>
    %422 = vector.shape_cast %419 : vector<8x1xf32> to vector<8x1xf32>
    %423 = vector.broadcast %422 : vector<8x1xf32> to vector<8x16xf32>
    %424 = vector.shape_cast %411 : vector<8x1xf32> to vector<8x1xf32>
    %425 = vector.broadcast %424 : vector<8x1xf32> to vector<8x16xf32>
    %426 = arith.select %421, %423, %425 : vector<8x16xi1>, vector<8x16xf32>
    %427 = arith.mulf %418, %411 : vector<8x1xf32>
    %cst_37 = arith.constant 0.000000e+00 : f32
    %428 = vector.broadcast %cst_37 : f32 to vector<8x1xf32>
    %429 = vector.shape_cast %69 : vector<1x16xi1> to vector<1x16xi1>
    %430 = vector.broadcast %429 : vector<1x16xi1> to vector<8x16xi1>
    %431 = vector.shape_cast %427 : vector<8x1xf32> to vector<8x1xf32>
    %432 = vector.broadcast %431 : vector<8x1xf32> to vector<8x16xf32>
    %433 = vector.shape_cast %428 : vector<8x1xf32> to vector<8x1xf32>
    %434 = vector.broadcast %433 : vector<8x1xf32> to vector<8x16xf32>
    %435 = arith.select %430, %432, %434 : vector<8x16xi1>, vector<8x16xf32>
    %436 = arith.mulf %413, %412 : vector<8x1xf32>
    %cst_38 = arith.constant 0.000000e+00 : f32
    %437 = vector.broadcast %cst_38 : f32 to vector<8x1xf32>
    %438 = arith.subf %437, %415 : vector<8x1xf32>
    %439 = arith.mulf %438, %412 : vector<8x1xf32>
    %440 = vector.shape_cast %69 : vector<1x16xi1> to vector<1x16xi1>
    %441 = vector.broadcast %440 : vector<1x16xi1> to vector<8x16xi1>
    %442 = vector.shape_cast %436 : vector<8x1xf32> to vector<8x1xf32>
    %443 = vector.broadcast %442 : vector<8x1xf32> to vector<8x16xf32>
    %444 = vector.shape_cast %439 : vector<8x1xf32> to vector<8x1xf32>
    %445 = vector.broadcast %444 : vector<8x1xf32> to vector<8x16xf32>
    %446 = arith.select %441, %443, %445 : vector<8x16xi1>, vector<8x16xf32>
    %447 = arith.mulf %414, %412 : vector<8x1xf32>
    %cst_39 = arith.constant 0.000000e+00 : f32
    %448 = vector.broadcast %cst_39 : f32 to vector<8x1xf32>
    %449 = arith.subf %448, %416 : vector<8x1xf32>
    %450 = arith.mulf %449, %412 : vector<8x1xf32>
    %451 = vector.shape_cast %69 : vector<1x16xi1> to vector<1x16xi1>
    %452 = vector.broadcast %451 : vector<1x16xi1> to vector<8x16xi1>
    %453 = vector.shape_cast %447 : vector<8x1xf32> to vector<8x1xf32>
    %454 = vector.broadcast %453 : vector<8x1xf32> to vector<8x16xf32>
    %455 = vector.shape_cast %450 : vector<8x1xf32> to vector<8x1xf32>
    %456 = vector.broadcast %455 : vector<8x1xf32> to vector<8x16xf32>
    %457 = arith.select %452, %454, %456 : vector<8x16xi1>, vector<8x16xf32>
    %c0_40 = arith.constant 0 : index
    %c0_41 = arith.constant 0 : index
    %458 = vector.load %arg3[%c0_40, %c0_41] : memref<8x16xf32, #tpu.memory_space<vmem>>, vector<8x16xf32>
    %c0_42 = arith.constant 0 : index
    %c0_43 = arith.constant 0 : index
    %459 = vector.load %arg4[%c0_42, %c0_43] : memref<8x16xf32, #tpu.memory_space<vmem>>, vector<8x16xf32>
    %460 = tpu.concatenate %458, %459 in 0 : vector<8x16xf32>, vector<8x16xf32> -> vector<16x16xf32>
    %cst_44 = arith.constant dense<0.000000e+00> : vector<16x16xf32>
    %461 = tpu.matmul %460, %15, %cst_44 {dimension_numbers = #tpu.dot_dimension_numbers<[1], [0], [0], [1], [0, 0, 1, 1], [], []>} : vector<16x16xf32>, vector<16x16xf32>, vector<16x16xf32> -> vector<16x16xf32>
    %462 = vector.extract_strided_slice %461 {offsets = [0, 0], sizes = [8, 16], strides = [1, 1]} : vector<16x16xf32> to vector<8x16xf32>
    %463 = vector.extract_strided_slice %461 {offsets = [8, 0], sizes = [8, 16], strides = [1, 1]} : vector<16x16xf32> to vector<8x16xf32>
    %464 = vector.broadcast %70 : vector<8x1xf32> to vector<8x16xf32>
    %465 = arith.mulf %464, %458 : vector<8x16xf32>
    %466 = vector.broadcast %71 : vector<8x1xf32> to vector<8x16xf32>
    %467 = arith.mulf %466, %463 : vector<8x16xf32>
    %468 = arith.addf %465, %467 : vector<8x16xf32>
    %469 = vector.broadcast %70 : vector<8x1xf32> to vector<8x16xf32>
    %470 = arith.mulf %469, %459 : vector<8x16xf32>
    %471 = vector.broadcast %71 : vector<8x1xf32> to vector<8x16xf32>
    %472 = arith.mulf %471, %462 : vector<8x16xf32>
    %473 = arith.subf %470, %472 : vector<8x16xf32>
    %474 = tpu.concatenate %468, %473 in 0 : vector<8x16xf32>, vector<8x16xf32> -> vector<16x16xf32>
    %cst_45 = arith.constant dense<0.000000e+00> : vector<16x16xf32>
    %475 = tpu.matmul %474, %20, %cst_45 {dimension_numbers = #tpu.dot_dimension_numbers<[1], [0], [0], [1], [0, 0, 1, 1], [], []>} : vector<16x16xf32>, vector<16x16xf32>, vector<16x16xf32> -> vector<16x16xf32>
    %476 = vector.extract_strided_slice %475 {offsets = [0, 0], sizes = [8, 16], strides = [1, 1]} : vector<16x16xf32> to vector<8x16xf32>
    %477 = vector.extract_strided_slice %475 {offsets = [8, 0], sizes = [8, 16], strides = [1, 1]} : vector<16x16xf32> to vector<8x16xf32>
    %478 = arith.mulf %87, %468 : vector<8x16xf32>
    %479 = arith.mulf %96, %473 : vector<8x16xf32>
    %480 = arith.subf %478, %479 : vector<8x16xf32>
    %481 = arith.mulf %107, %476 : vector<8x16xf32>
    %482 = arith.addf %480, %481 : vector<8x16xf32>
    %483 = arith.mulf %118, %477 : vector<8x16xf32>
    %484 = arith.subf %482, %483 : vector<8x16xf32>
    %485 = arith.mulf %87, %473 : vector<8x16xf32>
    %486 = arith.mulf %96, %468 : vector<8x16xf32>
    %487 = arith.addf %485, %486 : vector<8x16xf32>
    %488 = arith.mulf %107, %477 : vector<8x16xf32>
    %489 = arith.addf %487, %488 : vector<8x16xf32>
    %490 = arith.mulf %118, %476 : vector<8x16xf32>
    %491 = arith.addf %489, %490 : vector<8x16xf32>
    %492 = tpu.concatenate %484, %491 in 0 : vector<8x16xf32>, vector<8x16xf32> -> vector<16x16xf32>
    %cst_46 = arith.constant dense<0.000000e+00> : vector<16x16xf32>
    %493 = tpu.matmul %492, %31, %cst_46 {dimension_numbers = #tpu.dot_dimension_numbers<[1], [0], [0], [1], [0, 0, 1, 1], [], []>} : vector<16x16xf32>, vector<16x16xf32>, vector<16x16xf32> -> vector<16x16xf32>
    %494 = vector.extract_strided_slice %493 {offsets = [0, 0], sizes = [8, 16], strides = [1, 1]} : vector<16x16xf32> to vector<8x16xf32>
    %495 = vector.extract_strided_slice %493 {offsets = [8, 0], sizes = [8, 16], strides = [1, 1]} : vector<16x16xf32> to vector<8x16xf32>
    %496 = vector.broadcast %119 : vector<8x1xf32> to vector<8x16xf32>
    %497 = arith.mulf %496, %484 : vector<8x16xf32>
    %498 = vector.broadcast %120 : vector<8x1xf32> to vector<8x16xf32>
    %499 = arith.mulf %498, %495 : vector<8x16xf32>
    %500 = arith.addf %497, %499 : vector<8x16xf32>
    %501 = vector.broadcast %119 : vector<8x1xf32> to vector<8x16xf32>
    %502 = arith.mulf %501, %491 : vector<8x16xf32>
    %503 = vector.broadcast %120 : vector<8x1xf32> to vector<8x16xf32>
    %504 = arith.mulf %503, %494 : vector<8x16xf32>
    %505 = arith.subf %502, %504 : vector<8x16xf32>
    %506 = tpu.concatenate %500, %505 in 0 : vector<8x16xf32>, vector<8x16xf32> -> vector<16x16xf32>
    %cst_47 = arith.constant dense<0.000000e+00> : vector<16x16xf32>
    %507 = tpu.matmul %506, %36, %cst_47 {dimension_numbers = #tpu.dot_dimension_numbers<[1], [0], [0], [1], [0, 0, 1, 1], [], []>} : vector<16x16xf32>, vector<16x16xf32>, vector<16x16xf32> -> vector<16x16xf32>
    %508 = vector.extract_strided_slice %507 {offsets = [0, 0], sizes = [8, 16], strides = [1, 1]} : vector<16x16xf32> to vector<8x16xf32>
    %509 = vector.extract_strided_slice %507 {offsets = [8, 0], sizes = [8, 16], strides = [1, 1]} : vector<16x16xf32> to vector<8x16xf32>
    %510 = arith.mulf %136, %500 : vector<8x16xf32>
    %511 = arith.mulf %145, %505 : vector<8x16xf32>
    %512 = arith.subf %510, %511 : vector<8x16xf32>
    %513 = arith.mulf %156, %508 : vector<8x16xf32>
    %514 = arith.addf %512, %513 : vector<8x16xf32>
    %515 = arith.mulf %167, %509 : vector<8x16xf32>
    %516 = arith.subf %514, %515 : vector<8x16xf32>
    %517 = arith.mulf %136, %505 : vector<8x16xf32>
    %518 = arith.mulf %145, %500 : vector<8x16xf32>
    %519 = arith.addf %517, %518 : vector<8x16xf32>
    %520 = arith.mulf %156, %509 : vector<8x16xf32>
    %521 = arith.addf %519, %520 : vector<8x16xf32>
    %522 = arith.mulf %167, %508 : vector<8x16xf32>
    %523 = arith.addf %521, %522 : vector<8x16xf32>
    %524 = tpu.concatenate %516, %523 in 0 : vector<8x16xf32>, vector<8x16xf32> -> vector<16x16xf32>
    %cst_48 = arith.constant dense<0.000000e+00> : vector<16x16xf32>
    %525 = tpu.matmul %524, %47, %cst_48 {dimension_numbers = #tpu.dot_dimension_numbers<[1], [0], [0], [1], [0, 0, 1, 1], [], []>} : vector<16x16xf32>, vector<16x16xf32>, vector<16x16xf32> -> vector<16x16xf32>
    %526 = vector.extract_strided_slice %525 {offsets = [0, 0], sizes = [8, 16], strides = [1, 1]} : vector<16x16xf32> to vector<8x16xf32>
    %527 = vector.extract_strided_slice %525 {offsets = [8, 0], sizes = [8, 16], strides = [1, 1]} : vector<16x16xf32> to vector<8x16xf32>
    %528 = vector.broadcast %168 : vector<8x1xf32> to vector<8x16xf32>
    %529 = arith.mulf %528, %516 : vector<8x16xf32>
    %530 = vector.broadcast %169 : vector<8x1xf32> to vector<8x16xf32>
    %531 = arith.mulf %530, %527 : vector<8x16xf32>
    %532 = arith.addf %529, %531 : vector<8x16xf32>
    %533 = vector.broadcast %168 : vector<8x1xf32> to vector<8x16xf32>
    %534 = arith.mulf %533, %523 : vector<8x16xf32>
    %535 = vector.broadcast %169 : vector<8x1xf32> to vector<8x16xf32>
    %536 = arith.mulf %535, %526 : vector<8x16xf32>
    %537 = arith.subf %534, %536 : vector<8x16xf32>
    %538 = tpu.concatenate %532, %537 in 0 : vector<8x16xf32>, vector<8x16xf32> -> vector<16x16xf32>
    %cst_49 = arith.constant dense<0.000000e+00> : vector<16x16xf32>
    %539 = tpu.matmul %538, %52, %cst_49 {dimension_numbers = #tpu.dot_dimension_numbers<[1], [0], [0], [1], [0, 0, 1, 1], [], []>} : vector<16x16xf32>, vector<16x16xf32>, vector<16x16xf32> -> vector<16x16xf32>
    %540 = vector.extract_strided_slice %539 {offsets = [0, 0], sizes = [8, 16], strides = [1, 1]} : vector<16x16xf32> to vector<8x16xf32>
    %541 = vector.extract_strided_slice %539 {offsets = [8, 0], sizes = [8, 16], strides = [1, 1]} : vector<16x16xf32> to vector<8x16xf32>
    %542 = arith.mulf %185, %532 : vector<8x16xf32>
    %543 = arith.mulf %194, %537 : vector<8x16xf32>
    %544 = arith.subf %542, %543 : vector<8x16xf32>
    %545 = arith.mulf %205, %540 : vector<8x16xf32>
    %546 = arith.addf %544, %545 : vector<8x16xf32>
    %547 = arith.mulf %216, %541 : vector<8x16xf32>
    %548 = arith.subf %546, %547 : vector<8x16xf32>
    %549 = arith.mulf %185, %537 : vector<8x16xf32>
    %550 = arith.mulf %194, %532 : vector<8x16xf32>
    %551 = arith.addf %549, %550 : vector<8x16xf32>
    %552 = arith.mulf %205, %541 : vector<8x16xf32>
    %553 = arith.addf %551, %552 : vector<8x16xf32>
    %554 = arith.mulf %216, %540 : vector<8x16xf32>
    %555 = arith.addf %553, %554 : vector<8x16xf32>
    %556 = tpu.concatenate %548, %555 in 0 : vector<8x16xf32>, vector<8x16xf32> -> vector<16x16xf32>
    %cst_50 = arith.constant dense<0.000000e+00> : vector<16x16xf32>
    %557 = tpu.matmul %556, %63, %cst_50 {dimension_numbers = #tpu.dot_dimension_numbers<[1], [0], [0], [1], [0, 0, 1, 1], [], []>} : vector<16x16xf32>, vector<16x16xf32>, vector<16x16xf32> -> vector<16x16xf32>
    %558 = vector.extract_strided_slice %557 {offsets = [0, 0], sizes = [8, 16], strides = [1, 1]} : vector<16x16xf32> to vector<8x16xf32>
    %559 = vector.extract_strided_slice %557 {offsets = [8, 0], sizes = [8, 16], strides = [1, 1]} : vector<16x16xf32> to vector<8x16xf32>
    %560 = arith.mulf %232, %548 : vector<8x16xf32>
    %561 = arith.mulf %241, %555 : vector<8x16xf32>
    %562 = arith.subf %560, %561 : vector<8x16xf32>
    %563 = arith.mulf %252, %558 : vector<8x16xf32>
    %564 = arith.addf %562, %563 : vector<8x16xf32>
    %565 = arith.mulf %263, %559 : vector<8x16xf32>
    %566 = arith.subf %564, %565 : vector<8x16xf32>
    %567 = arith.mulf %232, %555 : vector<8x16xf32>
    %568 = arith.mulf %241, %548 : vector<8x16xf32>
    %569 = arith.addf %567, %568 : vector<8x16xf32>
    %570 = arith.mulf %252, %559 : vector<8x16xf32>
    %571 = arith.addf %569, %570 : vector<8x16xf32>
    %572 = arith.mulf %263, %558 : vector<8x16xf32>
    %573 = arith.addf %571, %572 : vector<8x16xf32>
    %574 = tpu.concatenate %566, %573 in 0 : vector<8x16xf32>, vector<8x16xf32> -> vector<16x16xf32>
    %cst_51 = arith.constant dense<0.000000e+00> : vector<16x16xf32>
    %575 = tpu.matmul %574, %15, %cst_51 {dimension_numbers = #tpu.dot_dimension_numbers<[1], [0], [0], [1], [0, 0, 1, 1], [], []>} : vector<16x16xf32>, vector<16x16xf32>, vector<16x16xf32> -> vector<16x16xf32>
    %576 = vector.extract_strided_slice %575 {offsets = [0, 0], sizes = [8, 16], strides = [1, 1]} : vector<16x16xf32> to vector<8x16xf32>
    %577 = vector.extract_strided_slice %575 {offsets = [8, 0], sizes = [8, 16], strides = [1, 1]} : vector<16x16xf32> to vector<8x16xf32>
    %578 = vector.broadcast %264 : vector<8x1xf32> to vector<8x16xf32>
    %579 = arith.mulf %578, %566 : vector<8x16xf32>
    %580 = vector.broadcast %265 : vector<8x1xf32> to vector<8x16xf32>
    %581 = arith.mulf %580, %577 : vector<8x16xf32>
    %582 = arith.addf %579, %581 : vector<8x16xf32>
    %583 = vector.broadcast %264 : vector<8x1xf32> to vector<8x16xf32>
    %584 = arith.mulf %583, %573 : vector<8x16xf32>
    %585 = vector.broadcast %265 : vector<8x1xf32> to vector<8x16xf32>
    %586 = arith.mulf %585, %576 : vector<8x16xf32>
    %587 = arith.subf %584, %586 : vector<8x16xf32>
    %588 = tpu.concatenate %582, %587 in 0 : vector<8x16xf32>, vector<8x16xf32> -> vector<16x16xf32>
    %cst_52 = arith.constant dense<0.000000e+00> : vector<16x16xf32>
    %589 = tpu.matmul %588, %20, %cst_52 {dimension_numbers = #tpu.dot_dimension_numbers<[1], [0], [0], [1], [0, 0, 1, 1], [], []>} : vector<16x16xf32>, vector<16x16xf32>, vector<16x16xf32> -> vector<16x16xf32>
    %590 = vector.extract_strided_slice %589 {offsets = [0, 0], sizes = [8, 16], strides = [1, 1]} : vector<16x16xf32> to vector<8x16xf32>
    %591 = vector.extract_strided_slice %589 {offsets = [8, 0], sizes = [8, 16], strides = [1, 1]} : vector<16x16xf32> to vector<8x16xf32>
    %592 = arith.mulf %281, %582 : vector<8x16xf32>
    %593 = arith.mulf %290, %587 : vector<8x16xf32>
    %594 = arith.subf %592, %593 : vector<8x16xf32>
    %595 = arith.mulf %301, %590 : vector<8x16xf32>
    %596 = arith.addf %594, %595 : vector<8x16xf32>
    %597 = arith.mulf %312, %591 : vector<8x16xf32>
    %598 = arith.subf %596, %597 : vector<8x16xf32>
    %599 = arith.mulf %281, %587 : vector<8x16xf32>
    %600 = arith.mulf %290, %582 : vector<8x16xf32>
    %601 = arith.addf %599, %600 : vector<8x16xf32>
    %602 = arith.mulf %301, %591 : vector<8x16xf32>
    %603 = arith.addf %601, %602 : vector<8x16xf32>
    %604 = arith.mulf %312, %590 : vector<8x16xf32>
    %605 = arith.addf %603, %604 : vector<8x16xf32>
    %606 = tpu.concatenate %598, %605 in 0 : vector<8x16xf32>, vector<8x16xf32> -> vector<16x16xf32>
    %cst_53 = arith.constant dense<0.000000e+00> : vector<16x16xf32>
    %607 = tpu.matmul %606, %31, %cst_53 {dimension_numbers = #tpu.dot_dimension_numbers<[1], [0], [0], [1], [0, 0, 1, 1], [], []>} : vector<16x16xf32>, vector<16x16xf32>, vector<16x16xf32> -> vector<16x16xf32>
    %608 = vector.extract_strided_slice %607 {offsets = [0, 0], sizes = [8, 16], strides = [1, 1]} : vector<16x16xf32> to vector<8x16xf32>
    %609 = vector.extract_strided_slice %607 {offsets = [8, 0], sizes = [8, 16], strides = [1, 1]} : vector<16x16xf32> to vector<8x16xf32>
    %610 = vector.broadcast %313 : vector<8x1xf32> to vector<8x16xf32>
    %611 = arith.mulf %610, %598 : vector<8x16xf32>
    %612 = vector.broadcast %314 : vector<8x1xf32> to vector<8x16xf32>
    %613 = arith.mulf %612, %609 : vector<8x16xf32>
    %614 = arith.addf %611, %613 : vector<8x16xf32>
    %615 = vector.broadcast %313 : vector<8x1xf32> to vector<8x16xf32>
    %616 = arith.mulf %615, %605 : vector<8x16xf32>
    %617 = vector.broadcast %314 : vector<8x1xf32> to vector<8x16xf32>
    %618 = arith.mulf %617, %608 : vector<8x16xf32>
    %619 = arith.subf %616, %618 : vector<8x16xf32>
    %620 = tpu.concatenate %614, %619 in 0 : vector<8x16xf32>, vector<8x16xf32> -> vector<16x16xf32>
    %cst_54 = arith.constant dense<0.000000e+00> : vector<16x16xf32>
    %621 = tpu.matmul %620, %36, %cst_54 {dimension_numbers = #tpu.dot_dimension_numbers<[1], [0], [0], [1], [0, 0, 1, 1], [], []>} : vector<16x16xf32>, vector<16x16xf32>, vector<16x16xf32> -> vector<16x16xf32>
    %622 = vector.extract_strided_slice %621 {offsets = [0, 0], sizes = [8, 16], strides = [1, 1]} : vector<16x16xf32> to vector<8x16xf32>
    %623 = vector.extract_strided_slice %621 {offsets = [8, 0], sizes = [8, 16], strides = [1, 1]} : vector<16x16xf32> to vector<8x16xf32>
    %624 = arith.mulf %330, %614 : vector<8x16xf32>
    %625 = arith.mulf %339, %619 : vector<8x16xf32>
    %626 = arith.subf %624, %625 : vector<8x16xf32>
    %627 = arith.mulf %350, %622 : vector<8x16xf32>
    %628 = arith.addf %626, %627 : vector<8x16xf32>
    %629 = arith.mulf %361, %623 : vector<8x16xf32>
    %630 = arith.subf %628, %629 : vector<8x16xf32>
    %631 = arith.mulf %330, %619 : vector<8x16xf32>
    %632 = arith.mulf %339, %614 : vector<8x16xf32>
    %633 = arith.addf %631, %632 : vector<8x16xf32>
    %634 = arith.mulf %350, %623 : vector<8x16xf32>
    %635 = arith.addf %633, %634 : vector<8x16xf32>
    %636 = arith.mulf %361, %622 : vector<8x16xf32>
    %637 = arith.addf %635, %636 : vector<8x16xf32>
    %638 = tpu.concatenate %630, %637 in 0 : vector<8x16xf32>, vector<8x16xf32> -> vector<16x16xf32>
    %cst_55 = arith.constant dense<0.000000e+00> : vector<16x16xf32>
    %639 = tpu.matmul %638, %47, %cst_55 {dimension_numbers = #tpu.dot_dimension_numbers<[1], [0], [0], [1], [0, 0, 1, 1], [], []>} : vector<16x16xf32>, vector<16x16xf32>, vector<16x16xf32> -> vector<16x16xf32>
    %640 = vector.extract_strided_slice %639 {offsets = [0, 0], sizes = [8, 16], strides = [1, 1]} : vector<16x16xf32> to vector<8x16xf32>
    %641 = vector.extract_strided_slice %639 {offsets = [8, 0], sizes = [8, 16], strides = [1, 1]} : vector<16x16xf32> to vector<8x16xf32>
    %642 = vector.broadcast %362 : vector<8x1xf32> to vector<8x16xf32>
    %643 = arith.mulf %642, %630 : vector<8x16xf32>
    %644 = vector.broadcast %363 : vector<8x1xf32> to vector<8x16xf32>
    %645 = arith.mulf %644, %641 : vector<8x16xf32>
    %646 = arith.addf %643, %645 : vector<8x16xf32>
    %647 = vector.broadcast %362 : vector<8x1xf32> to vector<8x16xf32>
    %648 = arith.mulf %647, %637 : vector<8x16xf32>
    %649 = vector.broadcast %363 : vector<8x1xf32> to vector<8x16xf32>
    %650 = arith.mulf %649, %640 : vector<8x16xf32>
    %651 = arith.subf %648, %650 : vector<8x16xf32>
    %652 = tpu.concatenate %646, %651 in 0 : vector<8x16xf32>, vector<8x16xf32> -> vector<16x16xf32>
    %cst_56 = arith.constant dense<0.000000e+00> : vector<16x16xf32>
    %653 = tpu.matmul %652, %52, %cst_56 {dimension_numbers = #tpu.dot_dimension_numbers<[1], [0], [0], [1], [0, 0, 1, 1], [], []>} : vector<16x16xf32>, vector<16x16xf32>, vector<16x16xf32> -> vector<16x16xf32>
    %654 = vector.extract_strided_slice %653 {offsets = [0, 0], sizes = [8, 16], strides = [1, 1]} : vector<16x16xf32> to vector<8x16xf32>
    %655 = vector.extract_strided_slice %653 {offsets = [8, 0], sizes = [8, 16], strides = [1, 1]} : vector<16x16xf32> to vector<8x16xf32>
    %656 = arith.mulf %379, %646 : vector<8x16xf32>
    %657 = arith.mulf %388, %651 : vector<8x16xf32>
    %658 = arith.subf %656, %657 : vector<8x16xf32>
    %659 = arith.mulf %399, %654 : vector<8x16xf32>
    %660 = arith.addf %658, %659 : vector<8x16xf32>
    %661 = arith.mulf %410, %655 : vector<8x16xf32>
    %662 = arith.subf %660, %661 : vector<8x16xf32>
    %663 = arith.mulf %379, %651 : vector<8x16xf32>
    %664 = arith.mulf %388, %646 : vector<8x16xf32>
    %665 = arith.addf %663, %664 : vector<8x16xf32>
    %666 = arith.mulf %399, %655 : vector<8x16xf32>
    %667 = arith.addf %665, %666 : vector<8x16xf32>
    %668 = arith.mulf %410, %654 : vector<8x16xf32>
    %669 = arith.addf %667, %668 : vector<8x16xf32>
    %670 = tpu.concatenate %662, %669 in 0 : vector<8x16xf32>, vector<8x16xf32> -> vector<16x16xf32>
    %cst_57 = arith.constant dense<0.000000e+00> : vector<16x16xf32>
    %671 = tpu.matmul %670, %63, %cst_57 {dimension_numbers = #tpu.dot_dimension_numbers<[1], [0], [0], [1], [0, 0, 1, 1], [], []>} : vector<16x16xf32>, vector<16x16xf32>, vector<16x16xf32> -> vector<16x16xf32>
    %672 = vector.extract_strided_slice %671 {offsets = [0, 0], sizes = [8, 16], strides = [1, 1]} : vector<16x16xf32> to vector<8x16xf32>
    %673 = vector.extract_strided_slice %671 {offsets = [8, 0], sizes = [8, 16], strides = [1, 1]} : vector<16x16xf32> to vector<8x16xf32>
    %674 = arith.mulf %426, %662 : vector<8x16xf32>
    %675 = arith.mulf %435, %669 : vector<8x16xf32>
    %676 = arith.subf %674, %675 : vector<8x16xf32>
    %677 = arith.mulf %446, %672 : vector<8x16xf32>
    %678 = arith.addf %676, %677 : vector<8x16xf32>
    %679 = arith.mulf %457, %673 : vector<8x16xf32>
    %680 = arith.subf %678, %679 : vector<8x16xf32>
    %681 = arith.mulf %426, %669 : vector<8x16xf32>
    %682 = arith.mulf %435, %662 : vector<8x16xf32>
    %683 = arith.addf %681, %682 : vector<8x16xf32>
    %684 = arith.mulf %446, %673 : vector<8x16xf32>
    %685 = arith.addf %683, %684 : vector<8x16xf32>
    %686 = arith.mulf %457, %672 : vector<8x16xf32>
    %687 = arith.addf %685, %686 : vector<8x16xf32>
    %688 = tpu.concatenate %680, %687 in 0 : vector<8x16xf32>, vector<8x16xf32> -> vector<16x16xf32>
    %c0_58 = arith.constant 0 : index
    %c0_59 = arith.constant 0 : index
    %689 = vector.load %arg5[%c0_58, %c0_59] : memref<16x16xf32, #tpu.memory_space<vmem>>, vector<16x16xf32>
    tpu.vector_store %arg5[%c0_58, %c0_59], %688 {strides = array<i32>} : memref<16x16xf32, #tpu.memory_space<vmem>>, vector<16x16xf32>,
    return
  }
}

</mosaic_0001>

<llo_original>
// kernel: tpu_custom_call.1
$region0: #{tpu_custom_call.1}
  #allocation0 [shape = 'u32[]', space=smem, size = 0x4, offset = 0x4, fixed_abs, tag = 'smem constant byte address 0x4 - core index']
  #allocation1 [shape = 'u32[144,128]{1,0:T(1,128)}', space=vmem, size = 0x12000, scoped, tag = 'internal scratch']
  %s0 = inlined_call_operand.hbm [shape: f32[8,16], index: 0, kind: input, shape index: {}]
  %s1 = inlined_call_operand.hbm [shape: f32[16,38], index: 1, kind: input, shape index: {}]
  %s2 = inlined_call_operand.vmem [shape: f32[1,38], index: 2, kind: input, shape index: {}]
  %s3 = inlined_call_operand.hbm [shape: f32[8,16], index: 3, kind: input, shape index: {}]
  %s4 = inlined_call_operand.hbm [shape: f32[8,16], index: 4, kind: input, shape index: {}]
  %s5 = inlined_call_operand.hbm [shape: f32[16,16], index: 5, kind: output, shape index: {}]
  %s6 = sld [smem:[#allocation0]]
  $region46: #{tpu_custom_call.1} parent=0
    _
  %s8 = ssub.s32 1, %s6
  %s9 = scalar_select 0, %s8, %s6
  $region1: #{tpu_custom_call.1} parent=0
    #allocation2 [shape = 'u8[4096]{0}', space=vmem, size = 0x1000, scoped, tag = 'input window, operand 0, single buffered']
    #allocation3 [shape = 's32[1]{0}', space=sflag, size = 0x4, scoped, tag = 'scoped memory for tpu_custom_call.1']
    #allocation4 [shape = 's32[1]{0}', space=sflag, size = 0x4, scoped, tag = 'scoped memory for tpu_custom_call.1']
    #allocation5 [shape = 'u8[8192]{0}', space=vmem, size = 0x2000, scoped, tag = 'input window, operand 1, single buffered']
    #allocation6 [shape = 's32[1]{0}', space=sflag, size = 0x4, scoped, tag = 'scoped memory for tpu_custom_call.1']
    #allocation7 [shape = 'u8[4096]{0}', space=vmem, size = 0x1000, scoped, tag = 'input window, operand 3, single buffered']
    #allocation8 [shape = 'u8[4096]{0}', space=vmem, size = 0x1000, scoped, tag = 'input window, operand 4, single buffered']
    #allocation9 [shape = 's32[1]{0}', space=sflag, size = 0x4, scoped, tag = 'scoped memory for tpu_custom_call.1']
    #allocation10 [shape = 'u8[8192]{0}', space=vmem, size = 0x2000, scoped, tag = 'output window, operand 0, single buffered']
    %10 = vsyncpa [#allocation3], 0
    %11 = vsyncpa [#allocation6], 0
    %12 = vsyncpa [#allocation9], 0
    %13 = vsyncpa [#allocation4], 0
    // Predicated region
    $region2: #{tpu_custom_call.1} parent=1 // pred_check
      _
    $region3: #{tpu_custom_call.1} parent=1 // pred_check_branch
      %15 = sbr.rel (0) target = $region5
    $region4: #{tpu_custom_call.1} parent=1 // pred_region
      %s17 = ssub.s32 128, 128
      %18 = vsyncadd [#allocation3], %s17
      %s20 = sshll.u32 [#allocation2], 4
      %s21 = int_to_ptr.vmem [resolvable:$true] %s20
      %23 = dma.hbm_to_vmem [thread:$0]  %s0, 128, %s21, [#allocation3]
    $region5: #{tpu_custom_call.1} parent=1 // pred_fallthru
      _
    // Predicated region
    $region6: #{tpu_custom_call.1} parent=1 // pred_check
      _
    $region7: #{tpu_custom_call.1} parent=1 // pred_check_branch
      %25 = sbr.rel (0) target = $region9
    $region8: #{tpu_custom_call.1} parent=1 // pred_region
      %s27 = ssub.s32 256, 256
      %28 = vsyncadd [#allocation6], %s27
      %s29 = sshll.u32 [#allocation5], 4
      %s30 = int_to_ptr.vmem [resolvable:$true] %s29
      %35 = dma.hbm_to_vmem [thread:$0]  %s1, 256, %s30, [#allocation6], 128, 128, 8
    $region9: #{tpu_custom_call.1} parent=1 // pred_fallthru
      _
    // Predicated region
    $region10: #{tpu_custom_call.1} parent=1 // pred_check
      _
    $region11: #{tpu_custom_call.1} parent=1 // pred_check_branch
      %37 = sbr.rel (0) target = $region13
    $region12: #{tpu_custom_call.1} parent=1 // pred_region
      _
    $region13: #{tpu_custom_call.1} parent=1 // pred_fallthru
      _
    // Predicated region
    $region14: #{tpu_custom_call.1} parent=1 // pred_check
      _
    $region15: #{tpu_custom_call.1} parent=1 // pred_check_branch
      %39 = sbr.rel (0) target = $region17
    $region16: #{tpu_custom_call.1} parent=1 // pred_region
      %s41 = ssub.s32 128, 128
      %42 = vsyncadd [#allocation6], %s41
      %s44 = sshll.u32 [#allocation7], 4
      %s45 = int_to_ptr.vmem [resolvable:$true] %s44
      %47 = dma.hbm_to_vmem [thread:$0]  %s3, 128, %s45, [#allocation6]
    $region17: #{tpu_custom_call.1} parent=1 // pred_fallthru
      _
    // Predicated region
    $region18: #{tpu_custom_call.1} parent=1 // pred_check
      _
    $region19: #{tpu_custom_call.1} parent=1 // pred_check_branch
      %49 = sbr.rel (0) target = $region21
    $region20: #{tpu_custom_call.1} parent=1 // pred_region
      %s51 = ssub.s32 128, 128
      %52 = vsyncadd [#allocation9], %s51
      %s54 = sshll.u32 [#allocation8], 4
      %s55 = int_to_ptr.vmem [resolvable:$true] %s54
      %57 = dma.hbm_to_vmem [thread:$0]  %s4, 128, %s55, [#allocation9]
    $region21: #{tpu_custom_call.1} parent=1 // pred_fallthru
      _
    // Predicated region
    $region22: #{tpu_custom_call.1} parent=1 // pred_check
      _
    $region23: #{tpu_custom_call.1} parent=1 // pred_check_branch
      %59 = sbr.rel (0) target = $region25
    $region24: #{tpu_custom_call.1} parent=1 // pred_region
      %60 = dma.done [#allocation3], 128
    $region25: #{tpu_custom_call.1} parent=1 // pred_fallthru
      _
    // Predicated region
    $region26: #{tpu_custom_call.1} parent=1 // pred_check
      _
    $region27: #{tpu_custom_call.1} parent=1 // pred_check_branch
      %62 = sbr.rel (0) target = $region29
    $region28: #{tpu_custom_call.1} parent=1 // pred_region
      %63 = dma.done [#allocation6], 256
    $region29: #{tpu_custom_call.1} parent=1 // pred_fallthru
      _
    // Predicated region
    $region30: #{tpu_custom_call.1} parent=1 // pred_check
      _
    $region31: #{tpu_custom_call.1} parent=1 // pred_check_branch
      %65 = sbr.rel (0) target = $region33
    $region32: #{tpu_custom_call.1} parent=1 // pred_region
      %66 = dma.done [#allocation6], 128
    $region33: #{tpu_custom_call.1} parent=1 // pred_fallthru
      _
    // Predicated region
    $region34: #{tpu_custom_call.1} parent=1 // pred_check
      _
    $region35: #{tpu_custom_call.1} parent=1 // pred_check_branch
      %68 = sbr.rel (0) target = $region37
    $region36: #{tpu_custom_call.1} parent=1 // pred_region
      %69 = dma.done [#allocation9], 128
    $region37: #{tpu_custom_call.1} parent=1 // pred_fallthru
      _
    %v70 = vld [vmem:[#allocation2] sm:$0xff]
    %v71 = vld [vmem:[#allocation5] sm:$0xff]
    %v72 = vld [vmem:[#allocation5 + $0x8] sm:$0xff]
    %v73 = vld [vmem:[%s2] sm:$0x1]
    %v75 = vlaneseq
    %v76 = vshrl.u32 %v75, 7
    %v77 = vsub.s32 0, %v76
    %v78 = vrot.slane %v73, %v77
    %vm80 = vcmask 130048
    %v82 = vsel %vm80, %v70, 0
    %84 = vmatprep.subr.mxu0 0.0
    %85 = vmatpush1.msra.mxu0 0.0
    %86 = vmatprep.subr.mxu0 0.0
    %87 = vmatpush1.msra.mxu0 0.0
    %88 = vmatprep.subr.mxu0 0.0
    %89 = vmatpush1.msra.mxu0 0.0
    %90 = vmatprep.subr.mxu0 0.0
    %91 = vmatpush1.msra.mxu0 0.0
    %92 = vmatprep.subr.mxu0 0.0
    %93 = vmatpush1.msra.mxu0 0.0
    %94 = vmatprep.subr.mxu0 0.0
    %95 = vmatpush1.msra.mxu0 0.0
    %96 = vmatprep.subr.mxu0 0.0
    %97 = vmatpush1.msra.mxu0 0.0
    %98 = vmatprep.subr.mxu0 0.0
    %99 = vmatpush1.msra.mxu0 0.0
    %100 = vmatprep.subr.mxu0 0.0
    %101 = vmatpush1.msra.mxu0 0.0
    %102 = vmatprep.subr.mxu0 0.0
    %103 = vmatpush1.msra.mxu0 0.0
    %104 = vmatprep.subr.mxu0 0.0
    %105 = vmatpush1.msra.mxu0 0.0
    %106 = vmatprep.subr.mxu0 0.0
    %107 = vmatpush1.msra.mxu0 0.0
    %108 = vmatprep.subr.mxu0 0.0
    %109 = vmatpush1.msra.mxu0 0.0
    %110 = vmatprep.subr.mxu0 0.0
    %111 = vmatpush1.msra.mxu0 0.0
    %112 = vmatprep.subr.mxu0 0.0
    %113 = vmatpush1.msra.mxu0 %v72
    %114 = vmatprep.subr.mxu0 0.0
    %115 = vmatpush1.msra.mxu0 %v71
    %116 = vmatprep.subr.mxu0 0.0
    %117 = vmatpush2.msra.mxu0 0.0
    %118 = vmatprep.subr.mxu0 0.0
    %119 = vmatpush2.msra.mxu0 0.0
    %120 = vmatprep.subr.mxu0 0.0
    %121 = vmatpush2.msra.mxu0 0.0
    %122 = vmatprep.subr.mxu0 0.0
    %123 = vmatpush2.msra.mxu0 0.0
    %124 = vmatprep.subr.mxu0 0.0
    %125 = vmatpush2.msra.mxu0 0.0
    %126 = vmatprep.subr.mxu0 0.0
    %127 = vmatpush2.msra.mxu0 0.0
    %128 = vmatprep.subr.mxu0 0.0
    %129 = vmatpush2.msra.mxu0 0.0
    %130 = vmatprep.subr.mxu0 0.0
    %131 = vmatpush2.msra.mxu0 0.0
    %132 = vmatprep.subr.mxu0 0.0
    %133 = vmatpush2.msra.mxu0 0.0
    %134 = vmatprep.subr.mxu0 0.0
    %135 = vmatpush2.msra.mxu0 0.0
    %136 = vmatprep.subr.mxu0 0.0
    %137 = vmatpush2.msra.mxu0 0.0
    %138 = vmatprep.subr.mxu0 0.0
    %139 = vmatpush2.msra.mxu0 0.0
    %140 = vmatprep.subr.mxu0 0.0
    %141 = vmatpush2.msra.mxu0 0.0
    %142 = vmatprep.subr.mxu0 0.0
    %143 = vmatpush2.msra.mxu0 0.0
    %144 = vmatprep.subr.mxu0 0.0
    %145 = vmatpush2.msra.mxu0 0.0
    %146 = vmatprep.subr.mxu0 0.0
    %147 = vmatpush2.msra.mxu0 0.0
    %148 = vmatprep.mubr.f32.mxu0 0.0
    %149 = vmatmul.mubr.f32.gmra.mxu0 %v82
    %v150 = vpop.f32.mrf.mxu0
    %v151 = vadd.f32 %v78, %v150
    %v152 = vpop.f32.mrf.mxu0
    %153 = vdwg.mxu0
    %v154 = vand.u32 2147483647, %v151
    %vm155 = vcmp.le.f32.partialorder %v154, 0.7853982
    %vm156 = vcmp.lt.s32.totalorder %v151, 0
    %v157 = vand.u32 %v151, 2139095040
    %v158 = vshrl.u32 %v157, 23
    %v159 = vsub.s32 %v158, 127
    %v160 = vand.u32 2147483647, %v151
    %v161 = vand.u32 %v160, 8388607
    %v162 = vor.u32 %v161, 8388608
    %v163 = vsub.s32 0, %v162
    %v164 = vadd.s32 %v159, 1
    %vm165 = vcmp.gt.s32.totalorder %v164, 0
    %v166 = vsel %vm165, %v164, 0
    %v167 = vshrl.u32 %v166, 5
    %v168 = vand.u32 %v166, 31
    %v169 = vsub.s32 32, %v168
    %v170 = vshrl.u32 683565275, %v169
    %v171 = vshll.u32 683565275, %v168
    %v172 = vshrl.u32 2475754826, %v169
    %v173 = vor.u32 %v171, %v172
    %v174 = vshll.u32 2475754826, %v168
    %v175 = vshrl.u32 2131351028, %v169
    %v176 = vor.u32 %v174, %v175
    %v177 = vshll.u32 2131351028, %v168
    %v178 = vshrl.u32 2102212464, %v169
    %v179 = vor.u32 %v177, %v178
    %v180 = vshll.u32 2102212464, %v168
    %v181 = vshrl.u32 920167782, %v169
    %v182 = vor.u32 %v180, %v181
    %v183 = vshll.u32 920167782, %v168
    %v184 = vshrl.u32 1326507024, %v169
    %v185 = vor.u32 %v183, %v184
    %vm186 = vcmp.lt.s32.totalorder %v167, 1
    %vm187 = vcmp.lt.s32.totalorder %v167, 2
    %vm188 = vcmp.lt.s32.totalorder %v167, 3
    %vm189 = vcmp.lt.s32.totalorder %v167, 4
    %v190 = vsel %vm186, %v170, %v173
    %v191 = vsel %vm189, %v179, 2102212464
    %v192 = vsel %vm188, %v176, %v191
    %v193 = vsel %vm187, %v190, %v192
    %v194 = vsel %vm186, %v173, %v176
    %v195 = vsel %vm189, %v182, 920167782
    %v196 = vsel %vm188, %v179, %v195
    %v197 = vsel %vm187, %v194, %v196
    %v198 = vsel %vm186, %v176, %v179
    %v199 = vsel %vm189, %v185, 1326507024
    %v200 = vsel %vm188, %v182, %v199
    %v201 = vsel %vm187, %v198, %v200
    %v202 = vshll.u32 %v162, 8
    %v203 = vmul.u32.u64.compose %v202, %v201
    %v204 = vextract.low.u32 %v203
    %v205 = vextract.high.u32 %v203
    %v206 = vmul.u32.u64.compose %v202, %v197
    %v207 = vextract.low.u32 %v206
    %v208 = vextract.high.u32 %v206
    %v209 = vmul.u32 %v202, %v193
    %v210 = vadd.s32 %v205, %v207
    %vm211 = vc.u32 %v205, %v207
    %v212 = vadd.s32 %v208, 1
    %v213 = vsel %vm211, %v212, %v208
    %v214 = vadd.s32 %v209, %v213
    %v215 = vadd.s32 %v214, 536870912
    %v216 = vshrl.u32 %v215, 30
    %v217 = vshll.u32 %v216, 30
    %v218 = vsub.s32 %v214, %v217
    %vm219 = vcmp.lt.s32.totalorder %v218, 0
    %v220 = vsub.s32 0, %v218
    %v221 = vsel %vm219, %v220, %v218
    %v222 = vclz %v221
    %v223 = vsub.s32 %v222, 2
    %vm224 = vcmp.gt.s32.totalorder 0, %v223
    %v225 = vsel %vm224, 0, %v223
    %v226 = vsub.s32 32, %v225
    %v227 = vshll.u32 %v218, %v225
    %v228 = vshrl.u32 %v210, %v226
    %v229 = vor.u32 %v227, %v228
    %v230 = vsub.s32 4294967266, %v225
    %v231 = vadd.s32 %v230, 127
    %v232 = vshll.u32 %v231, 23
    %v233 = vor.u32 4788187, %v232
    %v234 = vand.u32 2147483647, %v233
    %v236 = vcvt.s32.f32 %v229
    %v237 = vmul.f32 %v236, %v234
    %v238 = vxor.u32 %v237, 2147483648
    %v239 = vsel %vm156, %v238, %v237
    %v240 = vsub.s32 4, %v216
    %v241 = vsel %vm156, %v240, %v216
    %v242 = vsel %vm155, %v151, %v239
    %v243 = vsel %vm155, 0, %v241
    %v244 = vcosq.f32.pop %v242
    %v245 = vsinq.f32.pop %v242
    %vm246 = vweird.f32 %v151
    %v247 = vand.u32 %v243, 3
    %vm248 = vcmp.lt.s32.totalorder %v247, 2
    %vm249 = vcmp.eq.s32.totalorder %v247, 0
    %v250 = vxor.u32 %v245, 2147483648
    %v251 = vsel %vm249, %v244, %v250
    %vm252 = vcmp.eq.s32.totalorder %v247, 2
    %v253 = vxor.u32 %v244, 2147483648
    %v254 = vsel %vm252, %v253, %v245
    %v255 = vsel %vm248, %v251, %v254
    %v256 = vsel %vm246, nan, %v255
    %v257 = vand.u32 2147483647, %v151
    %vm258 = vcmp.le.f32.partialorder %v257, 0.7853982
    %vm259 = vcmp.lt.s32.totalorder %v151, 0
    %v260 = vand.u32 %v151, 2139095040
    %v261 = vshrl.u32 %v260, 23
    %v262 = vsub.s32 %v261, 127
    %v263 = vand.u32 2147483647, %v151
    %v264 = vand.u32 %v263, 8388607
    %v265 = vor.u32 %v264, 8388608
    %v266 = vsub.s32 0, %v265
    %v267 = vadd.s32 %v262, 1
    %vm268 = vcmp.gt.s32.totalorder %v267, 0
    %v269 = vsel %vm268, %v267, 0
    %v270 = vshrl.u32 %v269, 5
    %v271 = vand.u32 %v269, 31
    %v272 = vsub.s32 32, %v271
    %v273 = vshrl.u32 683565275, %v272
    %v274 = vshll.u32 683565275, %v271
    %v275 = vshrl.u32 2475754826, %v272
    %v276 = vor.u32 %v274, %v275
    %v277 = vshll.u32 2475754826, %v271
    %v278 = vshrl.u32 2131351028, %v272
    %v279 = vor.u32 %v277, %v278
    %v280 = vshll.u32 2131351028, %v271
    %v281 = vshrl.u32 2102212464, %v272
    %v282 = vor.u32 %v280, %v281
    %v283 = vshll.u32 2102212464, %v271
    %v284 = vshrl.u32 920167782, %v272
    %v285 = vor.u32 %v283, %v284
    %v286 = vshll.u32 920167782, %v271
    %v287 = vshrl.u32 1326507024, %v272
    %v288 = vor.u32 %v286, %v287
    %vm289 = vcmp.lt.s32.totalorder %v270, 1
    %vm290 = vcmp.lt.s32.totalorder %v270, 2
    %vm291 = vcmp.lt.s32.totalorder %v270, 3
    %vm292 = vcmp.lt.s32.totalorder %v270, 4
    %v293 = vsel %vm289, %v273, %v276
    %v294 = vsel %vm292, %v282, 2102212464
    %v295 = vsel %vm291, %v279, %v294
    %v296 = vsel %vm290, %v293, %v295
    %v297 = vsel %vm289, %v276, %v279
    %v298 = vsel %vm292, %v285, 920167782
    %v299 = vsel %vm291, %v282, %v298
    %v300 = vsel %vm290, %v297, %v299
    %v301 = vsel %vm289, %v279, %v282
    %v302 = vsel %vm292, %v288, 1326507024
    %v303 = vsel %vm291, %v285, %v302
    %v304 = vsel %vm290, %v301, %v303
    %v305 = vshll.u32 %v265, 8
    %v306 = vmul.u32.u64.compose %v305, %v304
    %v307 = vextract.low.u32 %v306
    %v308 = vextract.high.u32 %v306
    %v309 = vmul.u32.u64.compose %v305, %v300
    %v310 = vextract.low.u32 %v309
    %v311 = vextract.high.u32 %v309
    %v312 = vmul.u32 %v305, %v296
    %v313 = vadd.s32 %v308, %v310
    %vm314 = vc.u32 %v308, %v310
    %v315 = vadd.s32 %v311, 1
    %v316 = vsel %vm314, %v315, %v311
    %v317 = vadd.s32 %v312, %v316
    %v318 = vadd.s32 %v317, 536870912
    %v319 = vshrl.u32 %v318, 30
    %v320 = vshll.u32 %v319, 30
    %v321 = vsub.s32 %v317, %v320
    %vm322 = vcmp.lt.s32.totalorder %v321, 0
    %v323 = vsub.s32 0, %v321
    %v324 = vsel %vm322, %v323, %v321
    %v325 = vclz %v324
    %v326 = vsub.s32 %v325, 2
    %vm327 = vcmp.gt.s32.totalorder 0, %v326
    %v328 = vsel %vm327, 0, %v326
    %v329 = vsub.s32 32, %v328
    %v330 = vshll.u32 %v321, %v328
    %v331 = vshrl.u32 %v313, %v329
    %v332 = vor.u32 %v330, %v331
    %v333 = vsub.s32 4294967266, %v328
    %v334 = vadd.s32 %v333, 127
    %v335 = vshll.u32 %v334, 23
    %v336 = vor.u32 4788187, %v335
    %v337 = vand.u32 2147483647, %v336
    %v339 = vcvt.s32.f32 %v332
    %v340 = vmul.f32 %v339, %v337
    %v341 = vxor.u32 %v340, 2147483648
    %v342 = vsel %vm259, %v341, %v340
    %v343 = vsub.s32 4, %v319
    %v344 = vsel %vm259, %v343, %v319
    %v345 = vsel %vm258, %v151, %v342
    %v346 = vsel %vm258, 0, %v344
    %v347 = vcosq.f32.pop %v345
    %v348 = vsinq.f32.pop %v345
    %vm349 = vweird.f32 %v151
    %v350 = vadd.s32 %v346, 3
    %v351 = vand.u32 %v350, 3
    %vm352 = vcmp.lt.s32.totalorder %v351, 2
    %vm353 = vcmp.eq.s32.totalorder %v351, 0
    %v354 = vxor.u32 %v348, 2147483648
    %v355 = vsel %vm353, %v347, %v354
    %vm356 = vcmp.eq.s32.totalorder %v351, 2
    %v357 = vxor.u32 %v347, 2147483648
    %v358 = vsel %vm356, %v357, %v348
    %v359 = vsel %vm352, %v355, %v358
    %v360 = vsel %vm349, nan, %v359
    %v361 = vlaneseq
    %v362 = vshrl.u32 %v361, 7
    %v363 = vadd.s32 %v362, 8
    %v364 = vlaneseq
    %v365 = vand.u32 %v364, 127
    %v366 = vxor.u32 %v362, 12
    %v367 = vxor.u32 %v363, 12
    %vm368 = vcmp.eq.s32.totalorder %v365, %v366
    %vm369 = vcmp.eq.s32.totalorder %v365, %v367
    %v370 = vsel %vm368, 1, 0
    %v371 = vsel %vm369, 1, 0
    %v372 = vcvt.s32.f32 %v370
    %v373 = vcvt.s32.f32 %v371
    %v374 = vxor.u32 %v362, 8
    %v375 = vxor.u32 %v363, 8
    %vm376 = vcmp.eq.s32.totalorder %v365, %v374
    %vm377 = vcmp.eq.s32.totalorder %v365, %v375
    %v378 = vsel %vm376, 1, 0
    %v379 = vsel %vm377, 1, 0
    %v380 = vcvt.s32.f32 %v378
    %v381 = vcvt.s32.f32 %v379
    %v382 = vshra.s32 %v365, 3
    %v383 = vand.u32 %v382, 1
    %vm384 = vcmp.eq.s32.totalorder %v383, 1
    %v385 = vxor.u32 %v362, 6
    %v386 = vxor.u32 %v363, 6
    %vm387 = vcmp.eq.s32.totalorder %v365, %v385
    %vm388 = vcmp.eq.s32.totalorder %v365, %v386
    %v389 = vsel %vm387, 1, 0
    %v390 = vsel %vm388, 1, 0
    %v391 = vcvt.s32.f32 %v389
    %v392 = vcvt.s32.f32 %v390
    %v393 = vxor.u32 %v362, 4
    %v394 = vxor.u32 %v363, 4
    %vm395 = vcmp.eq.s32.totalorder %v365, %v393
    %vm396 = vcmp.eq.s32.totalorder %v365, %v394
    %v397 = vsel %vm395, 1, 0
    %v398 = vsel %vm396, 1, 0
    %v399 = vcvt.s32.f32 %v397
    %v400 = vcvt.s32.f32 %v398
    %v401 = vshra.s32 %v365, 2
    %v402 = vand.u32 %v401, 1
    %vm403 = vcmp.eq.s32.totalorder %v402, 1
    %v404 = vxor.u32 %v362, 3
    %v405 = vxor.u32 %v363, 3
    %vm406 = vcmp.eq.s32.totalorder %v365, %v404
    %vm407 = vcmp.eq.s32.totalorder %v365, %v405
    %v408 = vsel %vm406, 1, 0
    %v409 = vsel %vm407, 1, 0
    %v410 = vcvt.s32.f32 %v408
    %v411 = vcvt.s32.f32 %v409
    %v412 = vxor.u32 %v362, 2
    %v413 = vxor.u32 %v363, 2
    %vm414 = vcmp.eq.s32.totalorder %v365, %v412
    %vm415 = vcmp.eq.s32.totalorder %v365, %v413
    %v416 = vsel %vm414, 1, 0
    %v417 = vsel %vm415, 1, 0
    %v418 = vcvt.s32.f32 %v416
    %v419 = vcvt.s32.f32 %v417
    %v420 = vshra.s32 %v365, 1
    %v421 = vand.u32 %v420, 1
    %vm422 = vcmp.eq.s32.totalorder %v421, 1
    %v423 = vxor.u32 %v362, 1
    %v424 = vxor.u32 %v363, 1
    %vm425 = vcmp.eq.s32.totalorder %v365, %v423
    %vm426 = vcmp.eq.s32.totalorder %v365, %v424
    %v427 = vsel %vm425, 1, 0
    %v428 = vsel %vm426, 1, 0
    %v429 = vcvt.s32.f32 %v427
    %v430 = vcvt.s32.f32 %v428
    %v431 = vand.u32 %v365, 1
    %vm432 = vcmp.eq.s32.totalorder %v431, 1
    %434 = vrot.lane.b32.xlu0 %v256, 3
    %v435 = vpop.permute.xlu0 %434
    %v437 = vmul.f32 %v256, %v435
    %v438 = vsel %vm384, 1, 0
    %vm439 = vcmp.eq.s32.totalorder %v438, 1
    %441 = vset.pattern.permute.xlu0 4
    %442 = vperm.xlu0 %441, %v437
    %v443 = vpop.permute.xlu0 %442
    %445 = vset.pattern.permute.xlu0 1
    %446 = vperm.xlu0 %445, %v256
    %v447 = vpop.permute.xlu0 %446
    %v449 = vsel %vm439, %v443, %v447
    %v450 = vmul.f32 %v360, %v435
    %452 = vset.pattern.permute.xlu0 4
    %453 = vperm.xlu0 %452, %v450
    %v454 = vpop.permute.xlu0 %453
    %v456 = vsel %vm439, %v454, 0.0
    %458 = vrot.lane.b32.xlu0 %v360, 1
    %v459 = vpop.permute.xlu0 %458
    %v461 = vmul.f32 %v256, %v459
    %v462 = vsub.f32 0.0, %v256
    %463 = vrot.lane.b32.xlu0 %v360, 2
    %v464 = vpop.permute.xlu0 %463
    %v466 = vmul.f32 %v462, %v464
    %468 = vset.pattern.permute.xlu0 2
    %469 = vperm.xlu0 %468, %v461
    %v470 = vpop.permute.xlu0 %469
    %473 = vset.pattern.permute.xlu0 3
    %474 = vperm.xlu0 %473, %v466
    %v475 = vpop.permute.xlu0 %474
    %v477 = vsel %vm439, %v470, %v475
    %v478 = vmul.f32 %v360, %v459
    %v479 = vsub.f32 0.0, %v360
    %v480 = vmul.f32 %v479, %v464
    %482 = vset.pattern.permute.xlu0 2
    %483 = vperm.xlu0 %482, %v478
    %v484 = vpop.permute.xlu0 %483
    %487 = vset.pattern.permute.xlu0 3
    %488 = vperm.xlu0 %487, %v480
    %v489 = vpop.permute.xlu0 %488
    %v491 = vsel %vm439, %v484, %v489
    %v492 = vsel %vm403, 1, 0
    %vm493 = vcmp.eq.s32.totalorder %v492, 1
    %494 = vset.pattern.permute.xlu0 9
    %495 = vperm.xlu0 %494, %v437
    %v496 = vpop.permute.xlu0 %495
    %498 = vset.pattern.permute.xlu0 6
    %499 = vperm.xlu0 %498, %v256
    %v500 = vpop.permute.xlu0 %499
    %v502 = vsel %vm493, %v496, %v500
    %503 = vset.pattern.permute.xlu0 9
    %504 = vperm.xlu0 %503, %v450
    %v505 = vpop.permute.xlu0 %504
    %v507 = vsel %vm493, %v505, 0.0
    %508 = vset.pattern.permute.xlu0 7
    %509 = vperm.xlu0 %508, %v461
    %v510 = vpop.permute.xlu0 %509
    %512 = vset.pattern.permute.xlu0 8
    %513 = vperm.xlu0 %512, %v466
    %v514 = vpop.permute.xlu0 %513
    %v516 = vsel %vm493, %v510, %v514
    %517 = vset.pattern.permute.xlu0 7
    %518 = vperm.xlu0 %517, %v478
    %v519 = vpop.permute.xlu0 %518
    %521 = vset.pattern.permute.xlu0 8
    %522 = vperm.xlu0 %521, %v480
    %v523 = vpop.permute.xlu0 %522
    %v525 = vsel %vm493, %v519, %v523
    %v526 = vsel %vm422, 1, 0
    %vm527 = vcmp.eq.s32.totalorder %v526, 1
    %528 = vset.pattern.permute.xlu0 14
    %529 = vperm.xlu0 %528, %v437
    %v530 = vpop.permute.xlu0 %529
    %532 = vset.pattern.permute.xlu0 11
    %533 = vperm.xlu0 %532, %v256
    %v534 = vpop.permute.xlu0 %533
    %v536 = vsel %vm527, %v530, %v534
    %537 = vset.pattern.permute.xlu0 14
    %538 = vperm.xlu0 %537, %v450
    %v539 = vpop.permute.xlu0 %538
    %v541 = vsel %vm527, %v539, 0.0
    %542 = vset.pattern.permute.xlu0 12
    %543 = vperm.xlu0 %542, %v461
    %v544 = vpop.permute.xlu0 %543
    %546 = vset.pattern.permute.xlu0 13
    %547 = vperm.xlu0 %546, %v466
    %v548 = vpop.permute.xlu0 %547
    %v550 = vsel %vm527, %v544, %v548
    %551 = vset.pattern.permute.xlu0 12
    %552 = vperm.xlu0 %551, %v478
    %v553 = vpop.permute.xlu0 %552
    %555 = vset.pattern.permute.xlu0 13
    %556 = vperm.xlu0 %555, %v480
    %v557 = vpop.permute.xlu0 %556
    %v559 = vsel %vm527, %v553, %v557
    %v560 = vsel %vm432, 1, 0
    %vm561 = vcmp.eq.s32.totalorder %v560, 1
    %562 = vset.pattern.permute.xlu0 18
    %563 = vperm.xlu0 %562, %v437
    %v564 = vpop.permute.xlu0 %563
    %566 = vset.pattern.permute.xlu0 15
    %567 = vperm.xlu0 %566, %v256
    %v568 = vpop.permute.xlu0 %567
    %v570 = vsel %vm561, %v564, %v568
    %571 = vset.pattern.permute.xlu0 18
    %572 = vperm.xlu0 %571, %v450
    %v573 = vpop.permute.xlu0 %572
    %v575 = vsel %vm561, %v573, 0.0
    %576 = vset.pattern.permute.xlu0 16
    %577 = vperm.xlu0 %576, %v461
    %v578 = vpop.permute.xlu0 %577
    %580 = vset.pattern.permute.xlu0 17
    %581 = vperm.xlu0 %580, %v466
    %v582 = vpop.permute.xlu0 %581
    %v584 = vsel %vm561, %v578, %v582
    %585 = vset.pattern.permute.xlu0 16
    %586 = vperm.xlu0 %585, %v478
    %v587 = vpop.permute.xlu0 %586
    %589 = vset.pattern.permute.xlu0 17
    %590 = vperm.xlu0 %589, %v480
    %v591 = vpop.permute.xlu0 %590
    %v593 = vsel %vm561, %v587, %v591
    %594 = vset.pattern.permute.xlu0 23
    %595 = vperm.xlu0 %594, %v437
    %v596 = vpop.permute.xlu0 %595
    %598 = vset.pattern.permute.xlu0 20
    %599 = vperm.xlu0 %598, %v256
    %v600 = vpop.permute.xlu0 %599
    %v602 = vsel %vm439, %v596, %v600
    %603 = vset.pattern.permute.xlu0 23
    %604 = vperm.xlu0 %603, %v450
    %v605 = vpop.permute.xlu0 %604
    %v607 = vsel %vm439, %v605, 0.0
    %608 = vset.pattern.permute.xlu0 21
    %609 = vperm.xlu0 %608, %v461
    %v610 = vpop.permute.xlu0 %609
    %612 = vset.pattern.permute.xlu0 22
    %613 = vperm.xlu0 %612, %v466
    %v614 = vpop.permute.xlu0 %613
    %v616 = vsel %vm439, %v610, %v614
    %617 = vset.pattern.permute.xlu0 21
    %618 = vperm.xlu0 %617, %v478
    %v619 = vpop.permute.xlu0 %618
    %621 = vset.pattern.permute.xlu0 22
    %622 = vperm.xlu0 %621, %v480
    %v623 = vpop.permute.xlu0 %622
    %v625 = vsel %vm439, %v619, %v623
    %626 = vset.pattern.permute.xlu0 28
    %627 = vperm.xlu0 %626, %v437
    %v628 = vpop.permute.xlu0 %627
    %630 = vset.pattern.permute.xlu0 25
    %631 = vperm.xlu0 %630, %v256
    %v632 = vpop.permute.xlu0 %631
    %v634 = vsel %vm493, %v628, %v632
    %635 = vset.pattern.permute.xlu0 28
    %636 = vperm.xlu0 %635, %v450
    %v637 = vpop.permute.xlu0 %636
    %v639 = vsel %vm493, %v637, 0.0
    %640 = vset.pattern.permute.xlu0 26
    %641 = vperm.xlu0 %640, %v461
    %v642 = vpop.permute.xlu0 %641
    %644 = vset.pattern.permute.xlu0 27
    %645 = vperm.xlu0 %644, %v466
    %v646 = vpop.permute.xlu0 %645
    %v648 = vsel %vm493, %v642, %v646
    %649 = vset.pattern.permute.xlu0 26
    %650 = vperm.xlu0 %649, %v478
    %v651 = vpop.permute.xlu0 %650
    %653 = vset.pattern.permute.xlu0 27
    %654 = vperm.xlu0 %653, %v480
    %v655 = vpop.permute.xlu0 %654
    %v657 = vsel %vm493, %v651, %v655
    %658 = vset.pattern.permute.xlu0 33
    %659 = vperm.xlu0 %658, %v437
    %v660 = vpop.permute.xlu0 %659
    %662 = vset.pattern.permute.xlu0 30
    %663 = vperm.xlu0 %662, %v256
    %v664 = vpop.permute.xlu0 %663
    %v666 = vsel %vm527, %v660, %v664
    %667 = vset.pattern.permute.xlu0 33
    %668 = vperm.xlu0 %667, %v450
    %v669 = vpop.permute.xlu0 %668
    %v671 = vsel %vm527, %v669, 0.0
    %672 = vset.pattern.permute.xlu0 31
    %673 = vperm.xlu0 %672, %v461
    %v674 = vpop.permute.xlu0 %673
    %676 = vset.pattern.permute.xlu0 32
    %677 = vperm.xlu0 %676, %v466
    %v678 = vpop.permute.xlu0 %677
    %v680 = vsel %vm527, %v674, %v678
    %681 = vset.pattern.permute.xlu0 31
    %682 = vperm.xlu0 %681, %v478
    %v683 = vpop.permute.xlu0 %682
    %685 = vset.pattern.permute.xlu0 32
    %686 = vperm.xlu0 %685, %v480
    %v687 = vpop.permute.xlu0 %686
    %v689 = vsel %vm527, %v683, %v687
    %690 = vset.pattern.permute.xlu0 37
    %691 = vperm.xlu0 %690, %v437
    %v692 = vpop.permute.xlu0 %691
    %694 = vset.pattern.permute.xlu0 34
    %695 = vperm.xlu0 %694, %v256
    %v696 = vpop.permute.xlu0 %695
    %v698 = vsel %vm561, %v692, %v696
    %699 = vset.pattern.permute.xlu0 37
    %700 = vperm.xlu0 %699, %v450
    %v701 = vpop.permute.xlu0 %700
    %v703 = vsel %vm561, %v701, 0.0
    %704 = vset.pattern.permute.xlu0 35
    %705 = vperm.xlu0 %704, %v461
    %v706 = vpop.permute.xlu0 %705
    %708 = vset.pattern.permute.xlu0 36
    %709 = vperm.xlu0 %708, %v466
    %v710 = vpop.permute.xlu0 %709
    %v712 = vsel %vm561, %v706, %v710
    %713 = vset.pattern.permute.xlu0 35
    %714 = vperm.xlu0 %713, %v478
    %v715 = vpop.permute.xlu0 %714
    %717 = vset.pattern.permute.xlu0 36
    %718 = vperm.xlu0 %717, %v480
    %v719 = vpop.permute.xlu0 %718
    %v721 = vsel %vm561, %v715, %v719
    %v722 = vld [vmem:[#allocation7] sm:$0xff]
    %v723 = vld [vmem:[#allocation8] sm:$0xff]
    %v725 = vsel %vm80, %v722, 0
    %v728 = vsel %vm80, %v723, 0
    %730 = vmatprep.subr.mxu0 0.0
    %731 = vmatpush1.msra.mxu0 0.0
    %732 = vmatprep.subr.mxu0 0.0
    %733 = vmatpush1.msra.mxu0 0.0
    %734 = vmatprep.subr.mxu0 0.0
    %735 = vmatpush1.msra.mxu0 0.0
    %736 = vmatprep.subr.mxu0 0.0
    %737 = vmatpush1.msra.mxu0 0.0
    %738 = vmatprep.subr.mxu0 0.0
    %739 = vmatpush1.msra.mxu0 0.0
    %740 = vmatprep.subr.mxu0 0.0
    %741 = vmatpush1.msra.mxu0 0.0
    %742 = vmatprep.subr.mxu0 0.0
    %743 = vmatpush1.msra.mxu0 0.0
    %744 = vmatprep.subr.mxu0 0.0
    %745 = vmatpush1.msra.mxu0 0.0
    %746 = vmatprep.subr.mxu0 0.0
    %747 = vmatpush1.msra.mxu0 0.0
    %748 = vmatprep.subr.mxu0 0.0
    %749 = vmatpush1.msra.mxu0 0.0
    %750 = vmatprep.subr.mxu0 0.0
    %751 = vmatpush1.msra.mxu0 0.0
    %752 = vmatprep.subr.mxu0 0.0
    %753 = vmatpush1.msra.mxu0 0.0
    %754 = vmatprep.subr.mxu0 0.0
    %755 = vmatpush1.msra.mxu0 0.0
    %756 = vmatprep.subr.mxu0 0.0
    %757 = vmatpush1.msra.mxu0 0.0
    %758 = vmatprep.subr.mxu0 0.0
    %759 = vmatpush1.msra.mxu0 %v373
    %760 = vmatprep.subr.mxu0 0.0
    %761 = vmatpush1.msra.mxu0 %v372
    %762 = vmatprep.subr.mxu0 0.0
    %763 = vmatpush2.msra.mxu0 0.0
    %764 = vmatprep.subr.mxu0 0.0
    %765 = vmatpush2.msra.mxu0 0.0
    %766 = vmatprep.subr.mxu0 0.0
    %767 = vmatpush2.msra.mxu0 0.0
    %768 = vmatprep.subr.mxu0 0.0
    %769 = vmatpush2.msra.mxu0 0.0
    %770 = vmatprep.subr.mxu0 0.0
    %771 = vmatpush2.msra.mxu0 0.0
    %772 = vmatprep.subr.mxu0 0.0
    %773 = vmatpush2.msra.mxu0 0.0
    %774 = vmatprep.subr.mxu0 0.0
    %775 = vmatpush2.msra.mxu0 0.0
    %776 = vmatprep.subr.mxu0 0.0
    %777 = vmatpush2.msra.mxu0 0.0
    %778 = vmatprep.subr.mxu0 0.0
    %779 = vmatpush2.msra.mxu0 0.0
    %780 = vmatprep.subr.mxu0 0.0
    %781 = vmatpush2.msra.mxu0 0.0
    %782 = vmatprep.subr.mxu0 0.0
    %783 = vmatpush2.msra.mxu0 0.0
    %784 = vmatprep.subr.mxu0 0.0
    %785 = vmatpush2.msra.mxu0 0.0
    %786 = vmatprep.subr.mxu0 0.0
    %787 = vmatpush2.msra.mxu0 0.0
    %788 = vmatprep.subr.mxu0 0.0
    %789 = vmatpush2.msra.mxu0 0.0
    %790 = vmatprep.subr.mxu0 0.0
    %791 = vmatpush2.msra.mxu0 0.0
    %792 = vmatprep.subr.mxu0 0.0
    %793 = vmatpush2.msra.mxu0 0.0
    %794 = vmatprep.mubr.f32.mxu0 0.0
    %795 = vmatmul.mubr.f32.gmra.mxu0 %v725
    %v796 = vpop.f32.mrf.mxu0
    %v797 = vadd.f32 0.0, %v796
    %v798 = vpop.f32.mrf.mxu0
    %799 = vmatprep.mubr.f32.mxu0 0.0
    %800 = vmatmul.mubr.f32.gmra.mxu0 %v728
    %v801 = vpop.f32.mrf.mxu0
    %v802 = vadd.f32 0.0, %v801
    %v803 = vpop.f32.mrf.mxu0
    %804 = vdwg.mxu0
    %805 = vset.pattern.permute.xlu0 0
    %806 = vperm.xlu0 %805, %v256
    %v807 = vpop.permute.xlu0 %806
    %v809 = vmul.f32 %v807, %v722
    %810 = vset.pattern.permute.xlu0 0
    %811 = vperm.xlu0 %810, %v360
    %v812 = vpop.permute.xlu0 %811
    %v814 = vmul.f32 %v812, %v802
    %v815 = vadd.f32 %v809, %v814
    %v816 = vmul.f32 %v807, %v723
    %v817 = vmul.f32 %v812, %v797
    %v818 = vsub.f32 %v816, %v817
    %v820 = vsel %vm80, %v815, 0
    %v823 = vsel %vm80, %v818, 0
    %825 = vmatprep.subr.mxu0 0.0
    %826 = vmatpush1.msra.mxu0 0.0
    %827 = vmatprep.subr.mxu0 0.0
    %828 = vmatpush1.msra.mxu0 0.0
    %829 = vmatprep.subr.mxu0 0.0
    %830 = vmatpush1.msra.mxu0 0.0
    %831 = vmatprep.subr.mxu0 0.0
    %832 = vmatpush1.msra.mxu0 0.0
    %833 = vmatprep.subr.mxu0 0.0
    %834 = vmatpush1.msra.mxu0 0.0
    %835 = vmatprep.subr.mxu0 0.0
    %836 = vmatpush1.msra.mxu0 0.0
    %837 = vmatprep.subr.mxu0 0.0
    %838 = vmatpush1.msra.mxu0 0.0
    %839 = vmatprep.subr.mxu0 0.0
    %840 = vmatpush1.msra.mxu0 0.0
    %841 = vmatprep.subr.mxu0 0.0
    %842 = vmatpush1.msra.mxu0 0.0
    %843 = vmatprep.subr.mxu0 0.0
    %844 = vmatpush1.msra.mxu0 0.0
    %845 = vmatprep.subr.mxu0 0.0
    %846 = vmatpush1.msra.mxu0 0.0
    %847 = vmatprep.subr.mxu0 0.0
    %848 = vmatpush1.msra.mxu0 0.0
    %849 = vmatprep.subr.mxu0 0.0
    %850 = vmatpush1.msra.mxu0 0.0
    %851 = vmatprep.subr.mxu0 0.0
    %852 = vmatpush1.msra.mxu0 0.0
    %853 = vmatprep.subr.mxu0 0.0
    %854 = vmatpush1.msra.mxu0 %v381
    %855 = vmatprep.subr.mxu0 0.0
    %856 = vmatpush1.msra.mxu0 %v380
    %857 = vmatprep.subr.mxu0 0.0
    %858 = vmatpush2.msra.mxu0 0.0
    %859 = vmatprep.subr.mxu0 0.0
    %860 = vmatpush2.msra.mxu0 0.0
    %861 = vmatprep.subr.mxu0 0.0
    %862 = vmatpush2.msra.mxu0 0.0
    %863 = vmatprep.subr.mxu0 0.0
    %864 = vmatpush2.msra.mxu0 0.0
    %865 = vmatprep.subr.mxu0 0.0
    %866 = vmatpush2.msra.mxu0 0.0
    %867 = vmatprep.subr.mxu0 0.0
    %868 = vmatpush2.msra.mxu0 0.0
    %869 = vmatprep.subr.mxu0 0.0
    %870 = vmatpush2.msra.mxu0 0.0
    %871 = vmatprep.subr.mxu0 0.0
    %872 = vmatpush2.msra.mxu0 0.0
    %873 = vmatprep.subr.mxu0 0.0
    %874 = vmatpush2.msra.mxu0 0.0
    %875 = vmatprep.subr.mxu0 0.0
    %876 = vmatpush2.msra.mxu0 0.0
    %877 = vmatprep.subr.mxu0 0.0
    %878 = vmatpush2.msra.mxu0 0.0
    %879 = vmatprep.subr.mxu0 0.0
    %880 = vmatpush2.msra.mxu0 0.0
    %881 = vmatprep.subr.mxu0 0.0
    %882 = vmatpush2.msra.mxu0 0.0
    %883 = vmatprep.subr.mxu0 0.0
    %884 = vmatpush2.msra.mxu0 0.0
    %885 = vmatprep.subr.mxu0 0.0
    %886 = vmatpush2.msra.mxu0 0.0
    %887 = vmatprep.subr.mxu0 0.0
    %888 = vmatpush2.msra.mxu0 0.0
    %889 = vmatprep.mubr.f32.mxu0 0.0
    %890 = vmatmul.mubr.f32.gmra.mxu0 %v820
    %v891 = vpop.f32.mrf.mxu0
    %v892 = vadd.f32 0.0, %v891
    %v893 = vpop.f32.mrf.mxu0
    %894 = vmatprep.mubr.f32.mxu0 0.0
    %895 = vmatmul.mubr.f32.gmra.mxu0 %v823
    %v896 = vpop.f32.mrf.mxu0
    %v897 = vadd.f32 0.0, %v896
    %v898 = vpop.f32.mrf.mxu0
    %899 = vdwg.mxu0
    %v900 = vmul.f32 %v449, %v815
    %v901 = vmul.f32 %v456, %v818
    %v902 = vsub.f32 %v900, %v901
    %v903 = vmul.f32 %v477, %v892
    %v904 = vadd.f32 %v902, %v903
    %v905 = vmul.f32 %v491, %v897
    %v906 = vsub.f32 %v904, %v905
    %v907 = vmul.f32 %v449, %v818
    %v908 = vmul.f32 %v456, %v815
    %v909 = vadd.f32 %v907, %v908
    %v910 = vmul.f32 %v477, %v897
    %v911 = vadd.f32 %v909, %v910
    %v912 = vmul.f32 %v491, %v892
    %v913 = vadd.f32 %v911, %v912
    %v915 = vsel %vm80, %v906, 0
    %v918 = vsel %vm80, %v913, 0
    %920 = vmatprep.subr.mxu0 0.0
    %921 = vmatpush1.msra.mxu0 0.0
    %922 = vmatprep.subr.mxu0 0.0
    %923 = vmatpush1.msra.mxu0 0.0
    %924 = vmatprep.subr.mxu0 0.0
    %925 = vmatpush1.msra.mxu0 0.0
    %926 = vmatprep.subr.mxu0 0.0
    %927 = vmatpush1.msra.mxu0 0.0
    %928 = vmatprep.subr.mxu0 0.0
    %929 = vmatpush1.msra.mxu0 0.0
    %930 = vmatprep.subr.mxu0 0.0
    %931 = vmatpush1.msra.mxu0 0.0
    %932 = vmatprep.subr.mxu0 0.0
    %933 = vmatpush1.msra.mxu0 0.0
    %934 = vmatprep.subr.mxu0 0.0
    %935 = vmatpush1.msra.mxu0 0.0
    %936 = vmatprep.subr.mxu0 0.0
    %937 = vmatpush1.msra.mxu0 0.0
    %938 = vmatprep.subr.mxu0 0.0
    %939 = vmatpush1.msra.mxu0 0.0
    %940 = vmatprep.subr.mxu0 0.0
    %941 = vmatpush1.msra.mxu0 0.0
    %942 = vmatprep.subr.mxu0 0.0
    %943 = vmatpush1.msra.mxu0 0.0
    %944 = vmatprep.subr.mxu0 0.0
    %945 = vmatpush1.msra.mxu0 0.0
    %946 = vmatprep.subr.mxu0 0.0
    %947 = vmatpush1.msra.mxu0 0.0
    %948 = vmatprep.subr.mxu0 0.0
    %949 = vmatpush1.msra.mxu0 %v392
    %950 = vmatprep.subr.mxu0 0.0
    %951 = vmatpush1.msra.mxu0 %v391
    %952 = vmatprep.subr.mxu0 0.0
    %953 = vmatpush2.msra.mxu0 0.0
    %954 = vmatprep.subr.mxu0 0.0
    %955 = vmatpush2.msra.mxu0 0.0
    %956 = vmatprep.subr.mxu0 0.0
    %957 = vmatpush2.msra.mxu0 0.0
    %958 = vmatprep.subr.mxu0 0.0
    %959 = vmatpush2.msra.mxu0 0.0
    %960 = vmatprep.subr.mxu0 0.0
    %961 = vmatpush2.msra.mxu0 0.0
    %962 = vmatprep.subr.mxu0 0.0
    %963 = vmatpush2.msra.mxu0 0.0
    %964 = vmatprep.subr.mxu0 0.0
    %965 = vmatpush2.msra.mxu0 0.0
    %966 = vmatprep.subr.mxu0 0.0
    %967 = vmatpush2.msra.mxu0 0.0
    %968 = vmatprep.subr.mxu0 0.0
    %969 = vmatpush2.msra.mxu0 0.0
    %970 = vmatprep.subr.mxu0 0.0
    %971 = vmatpush2.msra.mxu0 0.0
    %972 = vmatprep.subr.mxu0 0.0
    %973 = vmatpush2.msra.mxu0 0.0
    %974 = vmatprep.subr.mxu0 0.0
    %975 = vmatpush2.msra.mxu0 0.0
    %976 = vmatprep.subr.mxu0 0.0
    %977 = vmatpush2.msra.mxu0 0.0
    %978 = vmatprep.subr.mxu0 0.0
    %979 = vmatpush2.msra.mxu0 0.0
    %980 = vmatprep.subr.mxu0 0.0
    %981 = vmatpush2.msra.mxu0 0.0
    %982 = vmatprep.subr.mxu0 0.0
    %983 = vmatpush2.msra.mxu0 0.0
    %984 = vmatprep.mubr.f32.mxu0 0.0
    %985 = vmatmul.mubr.f32.gmra.mxu0 %v915
    %v986 = vpop.f32.mrf.mxu0
    %v987 = vadd.f32 0.0, %v986
    %v988 = vpop.f32.mrf.mxu0
    %989 = vmatprep.mubr.f32.mxu0 0.0
    %990 = vmatmul.mubr.f32.gmra.mxu0 %v918
    %v991 = vpop.f32.mrf.mxu0
    %v992 = vadd.f32 0.0, %v991
    %v993 = vpop.f32.mrf.mxu0
    %994 = vdwg.mxu0
    %995 = vset.pattern.permute.xlu0 5
    %996 = vperm.xlu0 %995, %v256
    %v997 = vpop.permute.xlu0 %996
    %v999 = vmul.f32 %v997, %v906
    %1000 = vset.pattern.permute.xlu0 5
    %1001 = vperm.xlu0 %1000, %v360
    %v1002 = vpop.permute.xlu0 %1001
    %v1004 = vmul.f32 %v1002, %v992
    %v1005 = vadd.f32 %v999, %v1004
    %v1006 = vmul.f32 %v997, %v913
    %v1007 = vmul.f32 %v1002, %v987
    %v1008 = vsub.f32 %v1006, %v1007
    %v1010 = vsel %vm80, %v1005, 0
    %v1013 = vsel %vm80, %v1008, 0
    %1015 = vmatprep.subr.mxu0 0.0
    %1016 = vmatpush1.msra.mxu0 0.0
    %1017 = vmatprep.subr.mxu0 0.0
    %1018 = vmatpush1.msra.mxu0 0.0
    %1019 = vmatprep.subr.mxu0 0.0
    %1020 = vmatpush1.msra.mxu0 0.0
    %1021 = vmatprep.subr.mxu0 0.0
    %1022 = vmatpush1.msra.mxu0 0.0
    %1023 = vmatprep.subr.mxu0 0.0
    %1024 = vmatpush1.msra.mxu0 0.0
    %1025 = vmatprep.subr.mxu0 0.0
    %1026 = vmatpush1.msra.mxu0 0.0
    %1027 = vmatprep.subr.mxu0 0.0
    %1028 = vmatpush1.msra.mxu0 0.0
    %1029 = vmatprep.subr.mxu0 0.0
    %1030 = vmatpush1.msra.mxu0 0.0
    %1031 = vmatprep.subr.mxu0 0.0
    %1032 = vmatpush1.msra.mxu0 0.0
    %1033 = vmatprep.subr.mxu0 0.0
    %1034 = vmatpush1.msra.mxu0 0.0
    %1035 = vmatprep.subr.mxu0 0.0
    %1036 = vmatpush1.msra.mxu0 0.0
    %1037 = vmatprep.subr.mxu0 0.0
    %1038 = vmatpush1.msra.mxu0 0.0
    %1039 = vmatprep.subr.mxu0 0.0
    %1040 = vmatpush1.msra.mxu0 0.0
    %1041 = vmatprep.subr.mxu0 0.0
    %1042 = vmatpush1.msra.mxu0 0.0
    %1043 = vmatprep.subr.mxu0 0.0
    %1044 = vmatpush1.msra.mxu0 %v400
    %1045 = vmatprep.subr.mxu0 0.0
    %1046 = vmatpush1.msra.mxu0 %v399
    %1047 = vmatprep.subr.mxu0 0.0
    %1048 = vmatpush2.msra.mxu0 0.0
    %1049 = vmatprep.subr.mxu0 0.0
    %1050 = vmatpush2.msra.mxu0 0.0
    %1051 = vmatprep.subr.mxu0 0.0
    %1052 = vmatpush2.msra.mxu0 0.0
    %1053 = vmatprep.subr.mxu0 0.0
    %1054 = vmatpush2.msra.mxu0 0.0
    %1055 = vmatprep.subr.mxu0 0.0
    %1056 = vmatpush2.msra.mxu0 0.0
    %1057 = vmatprep.subr.mxu0 0.0
    %1058 = vmatpush2.msra.mxu0 0.0
    %1059 = vmatprep.subr.mxu0 0.0
    %1060 = vmatpush2.msra.mxu0 0.0
    %1061 = vmatprep.subr.mxu0 0.0
    %1062 = vmatpush2.msra.mxu0 0.0
    %1063 = vmatprep.subr.mxu0 0.0
    %1064 = vmatpush2.msra.mxu0 0.0
    %1065 = vmatprep.subr.mxu0 0.0
    %1066 = vmatpush2.msra.mxu0 0.0
    %1067 = vmatprep.subr.mxu0 0.0
    %1068 = vmatpush2.msra.mxu0 0.0
    %1069 = vmatprep.subr.mxu0 0.0
    %1070 = vmatpush2.msra.mxu0 0.0
    %1071 = vmatprep.subr.mxu0 0.0
    %1072 = vmatpush2.msra.mxu0 0.0
    %1073 = vmatprep.subr.mxu0 0.0
    %1074 = vmatpush2.msra.mxu0 0.0
    %1075 = vmatprep.subr.mxu0 0.0
    %1076 = vmatpush2.msra.mxu0 0.0
    %1077 = vmatprep.subr.mxu0 0.0
    %1078 = vmatpush2.msra.mxu0 0.0
    %1079 = vmatprep.mubr.f32.mxu0 0.0
    %1080 = vmatmul.mubr.f32.gmra.mxu0 %v1010
    %v1081 = vpop.f32.mrf.mxu0
    %v1082 = vadd.f32 0.0, %v1081
    %v1083 = vpop.f32.mrf.mxu0
    %1084 = vmatprep.mubr.f32.mxu0 0.0
    %1085 = vmatmul.mubr.f32.gmra.mxu0 %v1013
    %v1086 = vpop.f32.mrf.mxu0
    %v1087 = vadd.f32 0.0, %v1086
    %v1088 = vpop.f32.mrf.mxu0
    %1089 = vdwg.mxu0
    %v1090 = vmul.f32 %v502, %v1005
    %v1091 = vmul.f32 %v507, %v1008
    %v1092 = vsub.f32 %v1090, %v1091
    %v1093 = vmul.f32 %v516, %v1082
    %v1094 = vadd.f32 %v1092, %v1093
    %v1095 = vmul.f32 %v525, %v1087
    %v1096 = vsub.f32 %v1094, %v1095
    %v1097 = vmul.f32 %v502, %v1008
    %v1098 = vmul.f32 %v507, %v1005
    %v1099 = vadd.f32 %v1097, %v1098
    %v1100 = vmul.f32 %v516, %v1087
    %v1101 = vadd.f32 %v1099, %v1100
    %v1102 = vmul.f32 %v525, %v1082
    %v1103 = vadd.f32 %v1101, %v1102
    %v1105 = vsel %vm80, %v1096, 0
    %v1108 = vsel %vm80, %v1103, 0
    %1110 = vmatprep.subr.mxu0 0.0
    %1111 = vmatpush1.msra.mxu0 0.0
    %1112 = vmatprep.subr.mxu0 0.0
    %1113 = vmatpush1.msra.mxu0 0.0
    %1114 = vmatprep.subr.mxu0 0.0
    %1115 = vmatpush1.msra.mxu0 0.0
    %1116 = vmatprep.subr.mxu0 0.0
    %1117 = vmatpush1.msra.mxu0 0.0
    %1118 = vmatprep.subr.mxu0 0.0
    %1119 = vmatpush1.msra.mxu0 0.0
    %1120 = vmatprep.subr.mxu0 0.0
    %1121 = vmatpush1.msra.mxu0 0.0
    %1122 = vmatprep.subr.mxu0 0.0
    %1123 = vmatpush1.msra.mxu0 0.0
    %1124 = vmatprep.subr.mxu0 0.0
    %1125 = vmatpush1.msra.mxu0 0.0
    %1126 = vmatprep.subr.mxu0 0.0
    %1127 = vmatpush1.msra.mxu0 0.0
    %1128 = vmatprep.subr.mxu0 0.0
    %1129 = vmatpush1.msra.mxu0 0.0
    %1130 = vmatprep.subr.mxu0 0.0
    %1131 = vmatpush1.msra.mxu0 0.0
    %1132 = vmatprep.subr.mxu0 0.0
    %1133 = vmatpush1.msra.mxu0 0.0
    %1134 = vmatprep.subr.mxu0 0.0
    %1135 = vmatpush1.msra.mxu0 0.0
    %1136 = vmatprep.subr.mxu0 0.0
    %1137 = vmatpush1.msra.mxu0 0.0
    %1138 = vmatprep.subr.mxu0 0.0
    %1139 = vmatpush1.msra.mxu0 %v411
    %1140 = vmatprep.subr.mxu0 0.0
    %1141 = vmatpush1.msra.mxu0 %v410
    %1142 = vmatprep.subr.mxu0 0.0
    %1143 = vmatpush2.msra.mxu0 0.0
    %1144 = vmatprep.subr.mxu0 0.0
    %1145 = vmatpush2.msra.mxu0 0.0
    %1146 = vmatprep.subr.mxu0 0.0
    %1147 = vmatpush2.msra.mxu0 0.0
    %1148 = vmatprep.subr.mxu0 0.0
    %1149 = vmatpush2.msra.mxu0 0.0
    %1150 = vmatprep.subr.mxu0 0.0
    %1151 = vmatpush2.msra.mxu0 0.0
    %1152 = vmatprep.subr.mxu0 0.0
    %1153 = vmatpush2.msra.mxu0 0.0
    %1154 = vmatprep.subr.mxu0 0.0
    %1155 = vmatpush2.msra.mxu0 0.0
    %1156 = vmatprep.subr.mxu0 0.0
    %1157 = vmatpush2.msra.mxu0 0.0
    %1158 = vmatprep.subr.mxu0 0.0
    %1159 = vmatpush2.msra.mxu0 0.0
    %1160 = vmatprep.subr.mxu0 0.0
    %1161 = vmatpush2.msra.mxu0 0.0
    %1162 = vmatprep.subr.mxu0 0.0
    %1163 = vmatpush2.msra.mxu0 0.0
    %1164 = vmatprep.subr.mxu0 0.0
    %1165 = vmatpush2.msra.mxu0 0.0
    %1166 = vmatprep.subr.mxu0 0.0
    %1167 = vmatpush2.msra.mxu0 0.0
    %1168 = vmatprep.subr.mxu0 0.0
    %1169 = vmatpush2.msra.mxu0 0.0
    %1170 = vmatprep.subr.mxu0 0.0
    %1171 = vmatpush2.msra.mxu0 0.0
    %1172 = vmatprep.subr.mxu0 0.0
    %1173 = vmatpush2.msra.mxu0 0.0
    %1174 = vmatprep.mubr.f32.mxu0 0.0
    %1175 = vmatmul.mubr.f32.gmra.mxu0 %v1105
    %v1176 = vpop.f32.mrf.mxu0
    %v1177 = vadd.f32 0.0, %v1176
    %v1178 = vpop.f32.mrf.mxu0
    %1179 = vmatprep.mubr.f32.mxu0 0.0
    %1180 = vmatmul.mubr.f32.gmra.mxu0 %v1108
    %v1181 = vpop.f32.mrf.mxu0
    %v1182 = vadd.f32 0.0, %v1181
    %v1183 = vpop.f32.mrf.mxu0
    %1184 = vdwg.mxu0
    %1185 = vset.pattern.permute.xlu0 10
    %1186 = vperm.xlu0 %1185, %v256
    %v1187 = vpop.permute.xlu0 %1186
    %v1189 = vmul.f32 %v1187, %v1096
    %1190 = vset.pattern.permute.xlu0 10
    %1191 = vperm.xlu0 %1190, %v360
    %v1192 = vpop.permute.xlu0 %1191
    %v1194 = vmul.f32 %v1192, %v1182
    %v1195 = vadd.f32 %v1189, %v1194
    %v1196 = vmul.f32 %v1187, %v1103
    %v1197 = vmul.f32 %v1192, %v1177
    %v1198 = vsub.f32 %v1196, %v1197
    %v1200 = vsel %vm80, %v1195, 0
    %v1203 = vsel %vm80, %v1198, 0
    %1205 = vmatprep.subr.mxu0 0.0
    %1206 = vmatpush1.msra.mxu0 0.0
    %1207 = vmatprep.subr.mxu0 0.0
    %1208 = vmatpush1.msra.mxu0 0.0
    %1209 = vmatprep.subr.mxu0 0.0
    %1210 = vmatpush1.msra.mxu0 0.0
    %1211 = vmatprep.subr.mxu0 0.0
    %1212 = vmatpush1.msra.mxu0 0.0
    %1213 = vmatprep.subr.mxu0 0.0
    %1214 = vmatpush1.msra.mxu0 0.0
    %1215 = vmatprep.subr.mxu0 0.0
    %1216 = vmatpush1.msra.mxu0 0.0
    %1217 = vmatprep.subr.mxu0 0.0
    %1218 = vmatpush1.msra.mxu0 0.0
    %1219 = vmatprep.subr.mxu0 0.0
    %1220 = vmatpush1.msra.mxu0 0.0
    %1221 = vmatprep.subr.mxu0 0.0
    %1222 = vmatpush1.msra.mxu0 0.0
    %1223 = vmatprep.subr.mxu0 0.0
    %1224 = vmatpush1.msra.mxu0 0.0
    %1225 = vmatprep.subr.mxu0 0.0
    %1226 = vmatpush1.msra.mxu0 0.0
    %1227 = vmatprep.subr.mxu0 0.0
    %1228 = vmatpush1.msra.mxu0 0.0
    %1229 = vmatprep.subr.mxu0 0.0
    %1230 = vmatpush1.msra.mxu0 0.0
    %1231 = vmatprep.subr.mxu0 0.0
    %1232 = vmatpush1.msra.mxu0 0.0
    %1233 = vmatprep.subr.mxu0 0.0
    %1234 = vmatpush1.msra.mxu0 %v419
    %1235 = vmatprep.subr.mxu0 0.0
    %1236 = vmatpush1.msra.mxu0 %v418
    %1237 = vmatprep.subr.mxu0 0.0
    %1238 = vmatpush2.msra.mxu0 0.0
    %1239 = vmatprep.subr.mxu0 0.0
    %1240 = vmatpush2.msra.mxu0 0.0
    %1241 = vmatprep.subr.mxu0 0.0
    %1242 = vmatpush2.msra.mxu0 0.0
    %1243 = vmatprep.subr.mxu0 0.0
    %1244 = vmatpush2.msra.mxu0 0.0
    %1245 = vmatprep.subr.mxu0 0.0
    %1246 = vmatpush2.msra.mxu0 0.0
    %1247 = vmatprep.subr.mxu0 0.0
    %1248 = vmatpush2.msra.mxu0 0.0
    %1249 = vmatprep.subr.mxu0 0.0
    %1250 = vmatpush2.msra.mxu0 0.0
    %1251 = vmatprep.subr.mxu0 0.0
    %1252 = vmatpush2.msra.mxu0 0.0
    %1253 = vmatprep.subr.mxu0 0.0
    %1254 = vmatpush2.msra.mxu0 0.0
    %1255 = vmatprep.subr.mxu0 0.0
    %1256 = vmatpush2.msra.mxu0 0.0
    %1257 = vmatprep.subr.mxu0 0.0
    %1258 = vmatpush2.msra.mxu0 0.0
    %1259 = vmatprep.subr.mxu0 0.0
    %1260 = vmatpush2.msra.mxu0 0.0
    %1261 = vmatprep.subr.mxu0 0.0
    %1262 = vmatpush2.msra.mxu0 0.0
    %1263 = vmatprep.subr.mxu0 0.0
    %1264 = vmatpush2.msra.mxu0 0.0
    %1265 = vmatprep.subr.mxu0 0.0
    %1266 = vmatpush2.msra.mxu0 0.0
    %1267 = vmatprep.subr.mxu0 0.0
    %1268 = vmatpush2.msra.mxu0 0.0
    %1269 = vmatprep.mubr.f32.mxu0 0.0
    %1270 = vmatmul.mubr.f32.gmra.mxu0 %v1200
    %v1271 = vpop.f32.mrf.mxu0
    %v1272 = vadd.f32 0.0, %v1271
    %v1273 = vpop.f32.mrf.mxu0
    %1274 = vmatprep.mubr.f32.mxu0 0.0
    %1275 = vmatmul.mubr.f32.gmra.mxu0 %v1203
    %v1276 = vpop.f32.mrf.mxu0
    %v1277 = vadd.f32 0.0, %v1276
    %v1278 = vpop.f32.mrf.mxu0
    %1279 = vdwg.mxu0
    %v1280 = vmul.f32 %v536, %v1195
    %v1281 = vmul.f32 %v541, %v1198
    %v1282 = vsub.f32 %v1280, %v1281
    %v1283 = vmul.f32 %v550, %v1272
    %v1284 = vadd.f32 %v1282, %v1283
    %v1285 = vmul.f32 %v559, %v1277
    %v1286 = vsub.f32 %v1284, %v1285
    %v1287 = vmul.f32 %v536, %v1198
    %v1288 = vmul.f32 %v541, %v1195
    %v1289 = vadd.f32 %v1287, %v1288
    %v1290 = vmul.f32 %v550, %v1277
    %v1291 = vadd.f32 %v1289, %v1290
    %v1292 = vmul.f32 %v559, %v1272
    %v1293 = vadd.f32 %v1291, %v1292
    %v1295 = vsel %vm80, %v1286, 0
    %v1298 = vsel %vm80, %v1293, 0
    %1300 = vmatprep.subr.mxu0 0.0
    %1301 = vmatpush1.msra.mxu0 0.0
    %1302 = vmatprep.subr.mxu0 0.0
    %1303 = vmatpush1.msra.mxu0 0.0
    %1304 = vmatprep.subr.mxu0 0.0
    %1305 = vmatpush1.msra.mxu0 0.0
    %1306 = vmatprep.subr.mxu0 0.0
    %1307 = vmatpush1.msra.mxu0 0.0
    %1308 = vmatprep.subr.mxu0 0.0
    %1309 = vmatpush1.msra.mxu0 0.0
    %1310 = vmatprep.subr.mxu0 0.0
    %1311 = vmatpush1.msra.mxu0 0.0
    %1312 = vmatprep.subr.mxu0 0.0
    %1313 = vmatpush1.msra.mxu0 0.0
    %1314 = vmatprep.subr.mxu0 0.0
    %1315 = vmatpush1.msra.mxu0 0.0
    %1316 = vmatprep.subr.mxu0 0.0
    %1317 = vmatpush1.msra.mxu0 0.0
    %1318 = vmatprep.subr.mxu0 0.0
    %1319 = vmatpush1.msra.mxu0 0.0
    %1320 = vmatprep.subr.mxu0 0.0
    %1321 = vmatpush1.msra.mxu0 0.0
    %1322 = vmatprep.subr.mxu0 0.0
    %1323 = vmatpush1.msra.mxu0 0.0
    %1324 = vmatprep.subr.mxu0 0.0
    %1325 = vmatpush1.msra.mxu0 0.0
    %1326 = vmatprep.subr.mxu0 0.0
    %1327 = vmatpush1.msra.mxu0 0.0
    %1328 = vmatprep.subr.mxu0 0.0
    %1329 = vmatpush1.msra.mxu0 %v430
    %1330 = vmatprep.subr.mxu0 0.0
    %1331 = vmatpush1.msra.mxu0 %v429
    %1332 = vmatprep.subr.mxu0 0.0
    %1333 = vmatpush2.msra.mxu0 0.0
    %1334 = vmatprep.subr.mxu0 0.0
    %1335 = vmatpush2.msra.mxu0 0.0
    %1336 = vmatprep.subr.mxu0 0.0
    %1337 = vmatpush2.msra.mxu0 0.0
    %1338 = vmatprep.subr.mxu0 0.0
    %1339 = vmatpush2.msra.mxu0 0.0
    %1340 = vmatprep.subr.mxu0 0.0
    %1341 = vmatpush2.msra.mxu0 0.0
    %1342 = vmatprep.subr.mxu0 0.0
    %1343 = vmatpush2.msra.mxu0 0.0
    %1344 = vmatprep.subr.mxu0 0.0
    %1345 = vmatpush2.msra.mxu0 0.0
    %1346 = vmatprep.subr.mxu0 0.0
    %1347 = vmatpush2.msra.mxu0 0.0
    %1348 = vmatprep.subr.mxu0 0.0
    %1349 = vmatpush2.msra.mxu0 0.0
    %1350 = vmatprep.subr.mxu0 0.0
    %1351 = vmatpush2.msra.mxu0 0.0
    %1352 = vmatprep.subr.mxu0 0.0
    %1353 = vmatpush2.msra.mxu0 0.0
    %1354 = vmatprep.subr.mxu0 0.0
    %1355 = vmatpush2.msra.mxu0 0.0
    %1356 = vmatprep.subr.mxu0 0.0
    %1357 = vmatpush2.msra.mxu0 0.0
    %1358 = vmatprep.subr.mxu0 0.0
    %1359 = vmatpush2.msra.mxu0 0.0
    %1360 = vmatprep.subr.mxu0 0.0
    %1361 = vmatpush2.msra.mxu0 0.0
    %1362 = vmatprep.subr.mxu0 0.0
    %1363 = vmatpush2.msra.mxu0 0.0
    %1364 = vmatprep.mubr.f32.mxu0 0.0
    %1365 = vmatmul.mubr.f32.gmra.mxu0 %v1295
    %v1366 = vpop.f32.mrf.mxu0
    %v1367 = vadd.f32 0.0, %v1366
    %v1368 = vpop.f32.mrf.mxu0
    %1369 = vmatprep.mubr.f32.mxu0 0.0
    %1370 = vmatmul.mubr.f32.gmra.mxu0 %v1298
    %v1371 = vpop.f32.mrf.mxu0
    %v1372 = vadd.f32 0.0, %v1371
    %v1373 = vpop.f32.mrf.mxu0
    %1374 = vdwg.mxu0
    %v1375 = vmul.f32 %v570, %v1286
    %v1376 = vmul.f32 %v575, %v1293
    %v1377 = vsub.f32 %v1375, %v1376
    %v1378 = vmul.f32 %v584, %v1367
    %v1379 = vadd.f32 %v1377, %v1378
    %v1380 = vmul.f32 %v593, %v1372
    %v1381 = vsub.f32 %v1379, %v1380
    %v1382 = vmul.f32 %v570, %v1293
    %v1383 = vmul.f32 %v575, %v1286
    %v1384 = vadd.f32 %v1382, %v1383
    %v1385 = vmul.f32 %v584, %v1372
    %v1386 = vadd.f32 %v1384, %v1385
    %v1387 = vmul.f32 %v593, %v1367
    %v1388 = vadd.f32 %v1386, %v1387
    %v1390 = vsel %vm80, %v1381, 0
    %v1393 = vsel %vm80, %v1388, 0
    %1395 = vmatprep.subr.mxu0 0.0
    %1396 = vmatpush1.msra.mxu0 0.0
    %1397 = vmatprep.subr.mxu0 0.0
    %1398 = vmatpush1.msra.mxu0 0.0
    %1399 = vmatprep.subr.mxu0 0.0
    %1400 = vmatpush1.msra.mxu0 0.0
    %1401 = vmatprep.subr.mxu0 0.0
    %1402 = vmatpush1.msra.mxu0 0.0
    %1403 = vmatprep.subr.mxu0 0.0
    %1404 = vmatpush1.msra.mxu0 0.0
    %1405 = vmatprep.subr.mxu0 0.0
    %1406 = vmatpush1.msra.mxu0 0.0
    %1407 = vmatprep.subr.mxu0 0.0
    %1408 = vmatpush1.msra.mxu0 0.0
    %1409 = vmatprep.subr.mxu0 0.0
    %1410 = vmatpush1.msra.mxu0 0.0
    %1411 = vmatprep.subr.mxu0 0.0
    %1412 = vmatpush1.msra.mxu0 0.0
    %1413 = vmatprep.subr.mxu0 0.0
    %1414 = vmatpush1.msra.mxu0 0.0
    %1415 = vmatprep.subr.mxu0 0.0
    %1416 = vmatpush1.msra.mxu0 0.0
    %1417 = vmatprep.subr.mxu0 0.0
    %1418 = vmatpush1.msra.mxu0 0.0
    %1419 = vmatprep.subr.mxu0 0.0
    %1420 = vmatpush1.msra.mxu0 0.0
    %1421 = vmatprep.subr.mxu0 0.0
    %1422 = vmatpush1.msra.mxu0 0.0
    %1423 = vmatprep.subr.mxu0 0.0
    %1424 = vmatpush1.msra.mxu0 %v373
    %1425 = vmatprep.subr.mxu0 0.0
    %1426 = vmatpush1.msra.mxu0 %v372
    %1427 = vmatprep.subr.mxu0 0.0
    %1428 = vmatpush2.msra.mxu0 0.0
    %1429 = vmatprep.subr.mxu0 0.0
    %1430 = vmatpush2.msra.mxu0 0.0
    %1431 = vmatprep.subr.mxu0 0.0
    %1432 = vmatpush2.msra.mxu0 0.0
    %1433 = vmatprep.subr.mxu0 0.0
    %1434 = vmatpush2.msra.mxu0 0.0
    %1435 = vmatprep.subr.mxu0 0.0
    %1436 = vmatpush2.msra.mxu0 0.0
    %1437 = vmatprep.subr.mxu0 0.0
    %1438 = vmatpush2.msra.mxu0 0.0
    %1439 = vmatprep.subr.mxu0 0.0
    %1440 = vmatpush2.msra.mxu0 0.0
    %1441 = vmatprep.subr.mxu0 0.0
    %1442 = vmatpush2.msra.mxu0 0.0
    %1443 = vmatprep.subr.mxu0 0.0
    %1444 = vmatpush2.msra.mxu0 0.0
    %1445 = vmatprep.subr.mxu0 0.0
    %1446 = vmatpush2.msra.mxu0 0.0
    %1447 = vmatprep.subr.mxu0 0.0
    %1448 = vmatpush2.msra.mxu0 0.0
    %1449 = vmatprep.subr.mxu0 0.0
    %1450 = vmatpush2.msra.mxu0 0.0
    %1451 = vmatprep.subr.mxu0 0.0
    %1452 = vmatpush2.msra.mxu0 0.0
    %1453 = vmatprep.subr.mxu0 0.0
    %1454 = vmatpush2.msra.mxu0 0.0
    %1455 = vmatprep.subr.mxu0 0.0
    %1456 = vmatpush2.msra.mxu0 0.0
    %1457 = vmatprep.subr.mxu0 0.0
    %1458 = vmatpush2.msra.mxu0 0.0
    %1459 = vmatprep.mubr.f32.mxu0 0.0
    %1460 = vmatmul.mubr.f32.gmra.mxu0 %v1390
    %v1461 = vpop.f32.mrf.mxu0
    %v1462 = vadd.f32 0.0, %v1461
    %v1463 = vpop.f32.mrf.mxu0
    %1464 = vmatprep.mubr.f32.mxu0 0.0
    %1465 = vmatmul.mubr.f32.gmra.mxu0 %v1393
    %v1466 = vpop.f32.mrf.mxu0
    %v1467 = vadd.f32 0.0, %v1466
    %v1468 = vpop.f32.mrf.mxu0
    %1469 = vdwg.mxu0
    %1470 = vset.pattern.permute.xlu0 19
    %1471 = vperm.xlu0 %1470, %v256
    %v1472 = vpop.permute.xlu0 %1471
    %v1474 = vmul.f32 %v1472, %v1381
    %1475 = vset.pattern.permute.xlu0 19
    %1476 = vperm.xlu0 %1475, %v360
    %v1477 = vpop.permute.xlu0 %1476
    %v1479 = vmul.f32 %v1477, %v1467
    %v1480 = vadd.f32 %v1474, %v1479
    %v1481 = vmul.f32 %v1472, %v1388
    %v1482 = vmul.f32 %v1477, %v1462
    %v1483 = vsub.f32 %v1481, %v1482
    %v1485 = vsel %vm80, %v1480, 0
    %v1488 = vsel %vm80, %v1483, 0
    %1490 = vmatprep.subr.mxu0 0.0
    %1491 = vmatpush1.msra.mxu0 0.0
    %1492 = vmatprep.subr.mxu0 0.0
    %1493 = vmatpush1.msra.mxu0 0.0
    %1494 = vmatprep.subr.mxu0 0.0
    %1495 = vmatpush1.msra.mxu0 0.0
    %1496 = vmatprep.subr.mxu0 0.0
    %1497 = vmatpush1.msra.mxu0 0.0
    %1498 = vmatprep.subr.mxu0 0.0
    %1499 = vmatpush1.msra.mxu0 0.0
    %1500 = vmatprep.subr.mxu0 0.0
    %1501 = vmatpush1.msra.mxu0 0.0
    %1502 = vmatprep.subr.mxu0 0.0
    %1503 = vmatpush1.msra.mxu0 0.0
    %1504 = vmatprep.subr.mxu0 0.0
    %1505 = vmatpush1.msra.mxu0 0.0
    %1506 = vmatprep.subr.mxu0 0.0
    %1507 = vmatpush1.msra.mxu0 0.0
    %1508 = vmatprep.subr.mxu0 0.0
    %1509 = vmatpush1.msra.mxu0 0.0
    %1510 = vmatprep.subr.mxu0 0.0
    %1511 = vmatpush1.msra.mxu0 0.0
    %1512 = vmatprep.subr.mxu0 0.0
    %1513 = vmatpush1.msra.mxu0 0.0
    %1514 = vmatprep.subr.mxu0 0.0
    %1515 = vmatpush1.msra.mxu0 0.0
    %1516 = vmatprep.subr.mxu0 0.0
    %1517 = vmatpush1.msra.mxu0 0.0
    %1518 = vmatprep.subr.mxu0 0.0
    %1519 = vmatpush1.msra.mxu0 %v381
    %1520 = vmatprep.subr.mxu0 0.0
    %1521 = vmatpush1.msra.mxu0 %v380
    %1522 = vmatprep.subr.mxu0 0.0
    %1523 = vmatpush2.msra.mxu0 0.0
    %1524 = vmatprep.subr.mxu0 0.0
    %1525 = vmatpush2.msra.mxu0 0.0
    %1526 = vmatprep.subr.mxu0 0.0
    %1527 = vmatpush2.msra.mxu0 0.0
    %1528 = vmatprep.subr.mxu0 0.0
    %1529 = vmatpush2.msra.mxu0 0.0
    %1530 = vmatprep.subr.mxu0 0.0
    %1531 = vmatpush2.msra.mxu0 0.0
    %1532 = vmatprep.subr.mxu0 0.0
    %1533 = vmatpush2.msra.mxu0 0.0
    %1534 = vmatprep.subr.mxu0 0.0
    %1535 = vmatpush2.msra.mxu0 0.0
    %1536 = vmatprep.subr.mxu0 0.0
    %1537 = vmatpush2.msra.mxu0 0.0
    %1538 = vmatprep.subr.mxu0 0.0
    %1539 = vmatpush2.msra.mxu0 0.0
    %1540 = vmatprep.subr.mxu0 0.0
    %1541 = vmatpush2.msra.mxu0 0.0
    %1542 = vmatprep.subr.mxu0 0.0
    %1543 = vmatpush2.msra.mxu0 0.0
    %1544 = vmatprep.subr.mxu0 0.0
    %1545 = vmatpush2.msra.mxu0 0.0
    %1546 = vmatprep.subr.mxu0 0.0
    %1547 = vmatpush2.msra.mxu0 0.0
    %1548 = vmatprep.subr.mxu0 0.0
    %1549 = vmatpush2.msra.mxu0 0.0
    %1550 = vmatprep.subr.mxu0 0.0
    %1551 = vmatpush2.msra.mxu0 0.0
    %1552 = vmatprep.subr.mxu0 0.0
    %1553 = vmatpush2.msra.mxu0 0.0
    %1554 = vmatprep.mubr.f32.mxu0 0.0
    %1555 = vmatmul.mubr.f32.gmra.mxu0 %v1485
    %v1556 = vpop.f32.mrf.mxu0
    %v1557 = vadd.f32 0.0, %v1556
    %v1558 = vpop.f32.mrf.mxu0
    %1559 = vmatprep.mubr.f32.mxu0 0.0
    %1560 = vmatmul.mubr.f32.gmra.mxu0 %v1488
    %v1561 = vpop.f32.mrf.mxu0
    %v1562 = vadd.f32 0.0, %v1561
    %v1563 = vpop.f32.mrf.mxu0
    %1564 = vdwg.mxu0
    %v1565 = vmul.f32 %v602, %v1480
    %v1566 = vmul.f32 %v607, %v1483
    %v1567 = vsub.f32 %v1565, %v1566
    %v1568 = vmul.f32 %v616, %v1557
    %v1569 = vadd.f32 %v1567, %v1568
    %v1570 = vmul.f32 %v625, %v1562
    %v1571 = vsub.f32 %v1569, %v1570
    %v1572 = vmul.f32 %v602, %v1483
    %v1573 = vmul.f32 %v607, %v1480
    %v1574 = vadd.f32 %v1572, %v1573
    %v1575 = vmul.f32 %v616, %v1562
    %v1576 = vadd.f32 %v1574, %v1575
    %v1577 = vmul.f32 %v625, %v1557
    %v1578 = vadd.f32 %v1576, %v1577
    %v1580 = vsel %vm80, %v1571, 0
    %v1583 = vsel %vm80, %v1578, 0
    %1585 = vmatprep.subr.mxu0 0.0
    %1586 = vmatpush1.msra.mxu0 0.0
    %1587 = vmatprep.subr.mxu0 0.0
    %1588 = vmatpush1.msra.mxu0 0.0
    %1589 = vmatprep.subr.mxu0 0.0
    %1590 = vmatpush1.msra.mxu0 0.0
    %1591 = vmatprep.subr.mxu0 0.0
    %1592 = vmatpush1.msra.mxu0 0.0
    %1593 = vmatprep.subr.mxu0 0.0
    %1594 = vmatpush1.msra.mxu0 0.0
    %1595 = vmatprep.subr.mxu0 0.0
    %1596 = vmatpush1.msra.mxu0 0.0
    %1597 = vmatprep.subr.mxu0 0.0
    %1598 = vmatpush1.msra.mxu0 0.0
    %1599 = vmatprep.subr.mxu0 0.0
    %1600 = vmatpush1.msra.mxu0 0.0
    %1601 = vmatprep.subr.mxu0 0.0
    %1602 = vmatpush1.msra.mxu0 0.0
    %1603 = vmatprep.subr.mxu0 0.0
    %1604 = vmatpush1.msra.mxu0 0.0
    %1605 = vmatprep.subr.mxu0 0.0
    %1606 = vmatpush1.msra.mxu0 0.0
    %1607 = vmatprep.subr.mxu0 0.0
    %1608 = vmatpush1.msra.mxu0 0.0
    %1609 = vmatprep.subr.mxu0 0.0
    %1610 = vmatpush1.msra.mxu0 0.0
    %1611 = vmatprep.subr.mxu0 0.0
    %1612 = vmatpush1.msra.mxu0 0.0
    %1613 = vmatprep.subr.mxu0 0.0
    %1614 = vmatpush1.msra.mxu0 %v392
    %1615 = vmatprep.subr.mxu0 0.0
    %1616 = vmatpush1.msra.mxu0 %v391
    %1617 = vmatprep.subr.mxu0 0.0
    %1618 = vmatpush2.msra.mxu0 0.0
    %1619 = vmatprep.subr.mxu0 0.0
    %1620 = vmatpush2.msra.mxu0 0.0
    %1621 = vmatprep.subr.mxu0 0.0
    %1622 = vmatpush2.msra.mxu0 0.0
    %1623 = vmatprep.subr.mxu0 0.0
    %1624 = vmatpush2.msra.mxu0 0.0
    %1625 = vmatprep.subr.mxu0 0.0
    %1626 = vmatpush2.msra.mxu0 0.0
    %1627 = vmatprep.subr.mxu0 0.0
    %1628 = vmatpush2.msra.mxu0 0.0
    %1629 = vmatprep.subr.mxu0 0.0
    %1630 = vmatpush2.msra.mxu0 0.0
    %1631 = vmatprep.subr.mxu0 0.0
    %1632 = vmatpush2.msra.mxu0 0.0
    %1633 = vmatprep.subr.mxu0 0.0
    %1634 = vmatpush2.msra.mxu0 0.0
    %1635 = vmatprep.subr.mxu0 0.0
    %1636 = vmatpush2.msra.mxu0 0.0
    %1637 = vmatprep.subr.mxu0 0.0
    %1638 = vmatpush2.msra.mxu0 0.0
    %1639 = vmatprep.subr.mxu0 0.0
    %1640 = vmatpush2.msra.mxu0 0.0
    %1641 = vmatprep.subr.mxu0 0.0
    %1642 = vmatpush2.msra.mxu0 0.0
    %1643 = vmatprep.subr.mxu0 0.0
    %1644 = vmatpush2.msra.mxu0 0.0
    %1645 = vmatprep.subr.mxu0 0.0
    %1646 = vmatpush2.msra.mxu0 0.0
    %1647 = vmatprep.subr.mxu0 0.0
    %1648 = vmatpush2.msra.mxu0 0.0
    %1649 = vmatprep.mubr.f32.mxu0 0.0
    %1650 = vmatmul.mubr.f32.gmra.mxu0 %v1580
    %v1651 = vpop.f32.mrf.mxu0
    %v1652 = vadd.f32 0.0, %v1651
    %v1653 = vpop.f32.mrf.mxu0
    %1654 = vmatprep.mubr.f32.mxu0 0.0
    %1655 = vmatmul.mubr.f32.gmra.mxu0 %v1583
    %v1656 = vpop.f32.mrf.mxu0
    %v1657 = vadd.f32 0.0, %v1656
    %v1658 = vpop.f32.mrf.mxu0
    %1659 = vdwg.mxu0
    %1660 = vset.pattern.permute.xlu0 24
    %1661 = vperm.xlu0 %1660, %v256
    %v1662 = vpop.permute.xlu0 %1661
    %v1664 = vmul.f32 %v1662, %v1571
    %1665 = vset.pattern.permute.xlu0 24
    %1666 = vperm.xlu0 %1665, %v360
    %v1667 = vpop.permute.xlu0 %1666
    %v1669 = vmul.f32 %v1667, %v1657
    %v1670 = vadd.f32 %v1664, %v1669
    %v1671 = vmul.f32 %v1662, %v1578
    %v1672 = vmul.f32 %v1667, %v1652
    %v1673 = vsub.f32 %v1671, %v1672
    %v1675 = vsel %vm80, %v1670, 0
    %v1678 = vsel %vm80, %v1673, 0
    %1680 = vmatprep.subr.mxu0 0.0
    %1681 = vmatpush1.msra.mxu0 0.0
    %1682 = vmatprep.subr.mxu0 0.0
    %1683 = vmatpush1.msra.mxu0 0.0
    %1684 = vmatprep.subr.mxu0 0.0
    %1685 = vmatpush1.msra.mxu0 0.0
    %1686 = vmatprep.subr.mxu0 0.0
    %1687 = vmatpush1.msra.mxu0 0.0
    %1688 = vmatprep.subr.mxu0 0.0
    %1689 = vmatpush1.msra.mxu0 0.0
    %1690 = vmatprep.subr.mxu0 0.0
    %1691 = vmatpush1.msra.mxu0 0.0
    %1692 = vmatprep.subr.mxu0 0.0
    %1693 = vmatpush1.msra.mxu0 0.0
    %1694 = vmatprep.subr.mxu0 0.0
    %1695 = vmatpush1.msra.mxu0 0.0
    %1696 = vmatprep.subr.mxu0 0.0
    %1697 = vmatpush1.msra.mxu0 0.0
    %1698 = vmatprep.subr.mxu0 0.0
    %1699 = vmatpush1.msra.mxu0 0.0
    %1700 = vmatprep.subr.mxu0 0.0
    %1701 = vmatpush1.msra.mxu0 0.0
    %1702 = vmatprep.subr.mxu0 0.0
    %1703 = vmatpush1.msra.mxu0 0.0
    %1704 = vmatprep.subr.mxu0 0.0
    %1705 = vmatpush1.msra.mxu0 0.0
    %1706 = vmatprep.subr.mxu0 0.0
    %1707 = vmatpush1.msra.mxu0 0.0
    %1708 = vmatprep.subr.mxu0 0.0
    %1709 = vmatpush1.msra.mxu0 %v400
    %1710 = vmatprep.subr.mxu0 0.0
    %1711 = vmatpush1.msra.mxu0 %v399
    %1712 = vmatprep.subr.mxu0 0.0
    %1713 = vmatpush2.msra.mxu0 0.0
    %1714 = vmatprep.subr.mxu0 0.0
    %1715 = vmatpush2.msra.mxu0 0.0
    %1716 = vmatprep.subr.mxu0 0.0
    %1717 = vmatpush2.msra.mxu0 0.0
    %1718 = vmatprep.subr.mxu0 0.0
    %1719 = vmatpush2.msra.mxu0 0.0
    %1720 = vmatprep.subr.mxu0 0.0
    %1721 = vmatpush2.msra.mxu0 0.0
    %1722 = vmatprep.subr.mxu0 0.0
    %1723 = vmatpush2.msra.mxu0 0.0
    %1724 = vmatprep.subr.mxu0 0.0
    %1725 = vmatpush2.msra.mxu0 0.0
    %1726 = vmatprep.subr.mxu0 0.0
    %1727 = vmatpush2.msra.mxu0 0.0
    %1728 = vmatprep.subr.mxu0 0.0
    %1729 = vmatpush2.msra.mxu0 0.0
    %1730 = vmatprep.subr.mxu0 0.0
    %1731 = vmatpush2.msra.mxu0 0.0
    %1732 = vmatprep.subr.mxu0 0.0
    %1733 = vmatpush2.msra.mxu0 0.0
    %1734 = vmatprep.subr.mxu0 0.0
    %1735 = vmatpush2.msra.mxu0 0.0
    %1736 = vmatprep.subr.mxu0 0.0
    %1737 = vmatpush2.msra.mxu0 0.0
    %1738 = vmatprep.subr.mxu0 0.0
    %1739 = vmatpush2.msra.mxu0 0.0
    %1740 = vmatprep.subr.mxu0 0.0
    %1741 = vmatpush2.msra.mxu0 0.0
    %1742 = vmatprep.subr.mxu0 0.0
    %1743 = vmatpush2.msra.mxu0 0.0
    %1744 = vmatprep.mubr.f32.mxu0 0.0
    %1745 = vmatmul.mubr.f32.gmra.mxu0 %v1675
    %v1746 = vpop.f32.mrf.mxu0
    %v1747 = vadd.f32 0.0, %v1746
    %v1748 = vpop.f32.mrf.mxu0
    %1749 = vmatprep.mubr.f32.mxu0 0.0
    %1750 = vmatmul.mubr.f32.gmra.mxu0 %v1678
    %v1751 = vpop.f32.mrf.mxu0
    %v1752 = vadd.f32 0.0, %v1751
    %v1753 = vpop.f32.mrf.mxu0
    %1754 = vdwg.mxu0
    %v1755 = vmul.f32 %v634, %v1670
    %v1756 = vmul.f32 %v639, %v1673
    %v1757 = vsub.f32 %v1755, %v1756
    %v1758 = vmul.f32 %v648, %v1747
    %v1759 = vadd.f32 %v1757, %v1758
    %v1760 = vmul.f32 %v657, %v1752
    %v1761 = vsub.f32 %v1759, %v1760
    %v1762 = vmul.f32 %v634, %v1673
    %v1763 = vmul.f32 %v639, %v1670
    %v1764 = vadd.f32 %v1762, %v1763
    %v1765 = vmul.f32 %v648, %v1752
    %v1766 = vadd.f32 %v1764, %v1765
    %v1767 = vmul.f32 %v657, %v1747
    %v1768 = vadd.f32 %v1766, %v1767
    %v1770 = vsel %vm80, %v1761, 0
    %v1773 = vsel %vm80, %v1768, 0
    %1775 = vmatprep.subr.mxu0 0.0
    %1776 = vmatpush1.msra.mxu0 0.0
    %1777 = vmatprep.subr.mxu0 0.0
    %1778 = vmatpush1.msra.mxu0 0.0
    %1779 = vmatprep.subr.mxu0 0.0
    %1780 = vmatpush1.msra.mxu0 0.0
    %1781 = vmatprep.subr.mxu0 0.0
    %1782 = vmatpush1.msra.mxu0 0.0
    %1783 = vmatprep.subr.mxu0 0.0
    %1784 = vmatpush1.msra.mxu0 0.0
    %1785 = vmatprep.subr.mxu0 0.0
    %1786 = vmatpush1.msra.mxu0 0.0
    %1787 = vmatprep.subr.mxu0 0.0
    %1788 = vmatpush1.msra.mxu0 0.0
    %1789 = vmatprep.subr.mxu0 0.0
    %1790 = vmatpush1.msra.mxu0 0.0
    %1791 = vmatprep.subr.mxu0 0.0
    %1792 = vmatpush1.msra.mxu0 0.0
    %1793 = vmatprep.subr.mxu0 0.0
    %1794 = vmatpush1.msra.mxu0 0.0
    %1795 = vmatprep.subr.mxu0 0.0
    %1796 = vmatpush1.msra.mxu0 0.0
    %1797 = vmatprep.subr.mxu0 0.0
    %1798 = vmatpush1.msra.mxu0 0.0
    %1799 = vmatprep.subr.mxu0 0.0
    %1800 = vmatpush1.msra.mxu0 0.0
    %1801 = vmatprep.subr.mxu0 0.0
    %1802 = vmatpush1.msra.mxu0 0.0
    %1803 = vmatprep.subr.mxu0 0.0
    %1804 = vmatpush1.msra.mxu0 %v411
    %1805 = vmatprep.subr.mxu0 0.0
    %1806 = vmatpush1.msra.mxu0 %v410
    %1807 = vmatprep.subr.mxu0 0.0
    %1808 = vmatpush2.msra.mxu0 0.0
    %1809 = vmatprep.subr.mxu0 0.0
    %1810 = vmatpush2.msra.mxu0 0.0
    %1811 = vmatprep.subr.mxu0 0.0
    %1812 = vmatpush2.msra.mxu0 0.0
    %1813 = vmatprep.subr.mxu0 0.0
    %1814 = vmatpush2.msra.mxu0 0.0
    %1815 = vmatprep.subr.mxu0 0.0
    %1816 = vmatpush2.msra.mxu0 0.0
    %1817 = vmatprep.subr.mxu0 0.0
    %1818 = vmatpush2.msra.mxu0 0.0
    %1819 = vmatprep.subr.mxu0 0.0
    %1820 = vmatpush2.msra.mxu0 0.0
    %1821 = vmatprep.subr.mxu0 0.0
    %1822 = vmatpush2.msra.mxu0 0.0
    %1823 = vmatprep.subr.mxu0 0.0
    %1824 = vmatpush2.msra.mxu0 0.0
    %1825 = vmatprep.subr.mxu0 0.0
    %1826 = vmatpush2.msra.mxu0 0.0
    %1827 = vmatprep.subr.mxu0 0.0
    %1828 = vmatpush2.msra.mxu0 0.0
    %1829 = vmatprep.subr.mxu0 0.0
    %1830 = vmatpush2.msra.mxu0 0.0
    %1831 = vmatprep.subr.mxu0 0.0
    %1832 = vmatpush2.msra.mxu0 0.0
    %1833 = vmatprep.subr.mxu0 0.0
    %1834 = vmatpush2.msra.mxu0 0.0
    %1835 = vmatprep.subr.mxu0 0.0
    %1836 = vmatpush2.msra.mxu0 0.0
    %1837 = vmatprep.subr.mxu0 0.0
    %1838 = vmatpush2.msra.mxu0 0.0
    %1839 = vmatprep.mubr.f32.mxu0 0.0
    %1840 = vmatmul.mubr.f32.gmra.mxu0 %v1770
    %v1841 = vpop.f32.mrf.mxu0
    %v1842 = vadd.f32 0.0, %v1841
    %v1843 = vpop.f32.mrf.mxu0
    %1844 = vmatprep.mubr.f32.mxu0 0.0
    %1845 = vmatmul.mubr.f32.gmra.mxu0 %v1773
    %v1846 = vpop.f32.mrf.mxu0
    %v1847 = vadd.f32 0.0, %v1846
    %v1848 = vpop.f32.mrf.mxu0
    %1849 = vdwg.mxu0
    %1850 = vset.pattern.permute.xlu0 29
    %1851 = vperm.xlu0 %1850, %v256
    %v1852 = vpop.permute.xlu0 %1851
    %v1854 = vmul.f32 %v1852, %v1761
    %1855 = vset.pattern.permute.xlu0 29
    %1856 = vperm.xlu0 %1855, %v360
    %v1857 = vpop.permute.xlu0 %1856
    %v1859 = vmul.f32 %v1857, %v1847
    %v1860 = vadd.f32 %v1854, %v1859
    %v1861 = vmul.f32 %v1852, %v1768
    %v1862 = vmul.f32 %v1857, %v1842
    %v1863 = vsub.f32 %v1861, %v1862
    %v1865 = vsel %vm80, %v1860, 0
    %v1868 = vsel %vm80, %v1863, 0
    %1870 = vmatprep.subr.mxu0 0.0
    %1871 = vmatpush1.msra.mxu0 0.0
    %1872 = vmatprep.subr.mxu0 0.0
    %1873 = vmatpush1.msra.mxu0 0.0
    %1874 = vmatprep.subr.mxu0 0.0
    %1875 = vmatpush1.msra.mxu0 0.0
    %1876 = vmatprep.subr.mxu0 0.0
    %1877 = vmatpush1.msra.mxu0 0.0
    %1878 = vmatprep.subr.mxu0 0.0
    %1879 = vmatpush1.msra.mxu0 0.0
    %1880 = vmatprep.subr.mxu0 0.0
    %1881 = vmatpush1.msra.mxu0 0.0
    %1882 = vmatprep.subr.mxu0 0.0
    %1883 = vmatpush1.msra.mxu0 0.0
    %1884 = vmatprep.subr.mxu0 0.0
    %1885 = vmatpush1.msra.mxu0 0.0
    %1886 = vmatprep.subr.mxu0 0.0
    %1887 = vmatpush1.msra.mxu0 0.0
    %1888 = vmatprep.subr.mxu0 0.0
    %1889 = vmatpush1.msra.mxu0 0.0
    %1890 = vmatprep.subr.mxu0 0.0
    %1891 = vmatpush1.msra.mxu0 0.0
    %1892 = vmatprep.subr.mxu0 0.0
    %1893 = vmatpush1.msra.mxu0 0.0
    %1894 = vmatprep.subr.mxu0 0.0
    %1895 = vmatpush1.msra.mxu0 0.0
    %1896 = vmatprep.subr.mxu0 0.0
    %1897 = vmatpush1.msra.mxu0 0.0
    %1898 = vmatprep.subr.mxu0 0.0
    %1899 = vmatpush1.msra.mxu0 %v419
    %1900 = vmatprep.subr.mxu0 0.0
    %1901 = vmatpush1.msra.mxu0 %v418
    %1902 = vmatprep.subr.mxu0 0.0
    %1903 = vmatpush2.msra.mxu0 0.0
    %1904 = vmatprep.subr.mxu0 0.0
    %1905 = vmatpush2.msra.mxu0 0.0
    %1906 = vmatprep.subr.mxu0 0.0
    %1907 = vmatpush2.msra.mxu0 0.0
    %1908 = vmatprep.subr.mxu0 0.0
    %1909 = vmatpush2.msra.mxu0 0.0
    %1910 = vmatprep.subr.mxu0 0.0
    %1911 = vmatpush2.msra.mxu0 0.0
    %1912 = vmatprep.subr.mxu0 0.0
    %1913 = vmatpush2.msra.mxu0 0.0
    %1914 = vmatprep.subr.mxu0 0.0
    %1915 = vmatpush2.msra.mxu0 0.0
    %1916 = vmatprep.subr.mxu0 0.0
    %1917 = vmatpush2.msra.mxu0 0.0
    %1918 = vmatprep.subr.mxu0 0.0
    %1919 = vmatpush2.msra.mxu0 0.0
    %1920 = vmatprep.subr.mxu0 0.0
    %1921 = vmatpush2.msra.mxu0 0.0
    %1922 = vmatprep.subr.mxu0 0.0
    %1923 = vmatpush2.msra.mxu0 0.0
    %1924 = vmatprep.subr.mxu0 0.0
    %1925 = vmatpush2.msra.mxu0 0.0
    %1926 = vmatprep.subr.mxu0 0.0
    %1927 = vmatpush2.msra.mxu0 0.0
    %1928 = vmatprep.subr.mxu0 0.0
    %1929 = vmatpush2.msra.mxu0 0.0
    %1930 = vmatprep.subr.mxu0 0.0
    %1931 = vmatpush2.msra.mxu0 0.0
    %1932 = vmatprep.subr.mxu0 0.0
    %1933 = vmatpush2.msra.mxu0 0.0
    %1934 = vmatprep.mubr.f32.mxu0 0.0
    %1935 = vmatmul.mubr.f32.gmra.mxu0 %v1865
    %v1936 = vpop.f32.mrf.mxu0
    %v1937 = vadd.f32 0.0, %v1936
    %v1938 = vpop.f32.mrf.mxu0
    %1939 = vmatprep.mubr.f32.mxu0 0.0
    %1940 = vmatmul.mubr.f32.gmra.mxu0 %v1868
    %v1941 = vpop.f32.mrf.mxu0
    %v1942 = vadd.f32 0.0, %v1941
    %v1943 = vpop.f32.mrf.mxu0
    %1944 = vdwg.mxu0
    %v1945 = vmul.f32 %v666, %v1860
    %v1946 = vmul.f32 %v671, %v1863
    %v1947 = vsub.f32 %v1945, %v1946
    %v1948 = vmul.f32 %v680, %v1937
    %v1949 = vadd.f32 %v1947, %v1948
    %v1950 = vmul.f32 %v689, %v1942
    %v1951 = vsub.f32 %v1949, %v1950
    %v1952 = vmul.f32 %v666, %v1863
    %v1953 = vmul.f32 %v671, %v1860
    %v1954 = vadd.f32 %v1952, %v1953
    %v1955 = vmul.f32 %v680, %v1942
    %v1956 = vadd.f32 %v1954, %v1955
    %v1957 = vmul.f32 %v689, %v1937
    %v1958 = vadd.f32 %v1956, %v1957
    %v1960 = vsel %vm80, %v1951, 0
    %v1963 = vsel %vm80, %v1958, 0
    %1965 = vmatprep.subr.mxu0 0.0
    %1966 = vmatpush1.msra.mxu0 0.0
    %1967 = vmatprep.subr.mxu0 0.0
    %1968 = vmatpush1.msra.mxu0 0.0
    %1969 = vmatprep.subr.mxu0 0.0
    %1970 = vmatpush1.msra.mxu0 0.0
    %1971 = vmatprep.subr.mxu0 0.0
    %1972 = vmatpush1.msra.mxu0 0.0
    %1973 = vmatprep.subr.mxu0 0.0
    %1974 = vmatpush1.msra.mxu0 0.0
    %1975 = vmatprep.subr.mxu0 0.0
    %1976 = vmatpush1.msra.mxu0 0.0
    %1977 = vmatprep.subr.mxu0 0.0
    %1978 = vmatpush1.msra.mxu0 0.0
    %1979 = vmatprep.subr.mxu0 0.0
    %1980 = vmatpush1.msra.mxu0 0.0
    %1981 = vmatprep.subr.mxu0 0.0
    %1982 = vmatpush1.msra.mxu0 0.0
    %1983 = vmatprep.subr.mxu0 0.0
    %1984 = vmatpush1.msra.mxu0 0.0
    %1985 = vmatprep.subr.mxu0 0.0
    %1986 = vmatpush1.msra.mxu0 0.0
    %1987 = vmatprep.subr.mxu0 0.0
    %1988 = vmatpush1.msra.mxu0 0.0
    %1989 = vmatprep.subr.mxu0 0.0
    %1990 = vmatpush1.msra.mxu0 0.0
    %1991 = vmatprep.subr.mxu0 0.0
    %1992 = vmatpush1.msra.mxu0 0.0
    %1993 = vmatprep.subr.mxu0 0.0
    %1994 = vmatpush1.msra.mxu0 %v430
    %1995 = vmatprep.subr.mxu0 0.0
    %1996 = vmatpush1.msra.mxu0 %v429
    %1997 = vmatprep.subr.mxu0 0.0
    %1998 = vmatpush2.msra.mxu0 0.0
    %1999 = vmatprep.subr.mxu0 0.0
    %2000 = vmatpush2.msra.mxu0 0.0
    %2001 = vmatprep.subr.mxu0 0.0
    %2002 = vmatpush2.msra.mxu0 0.0
    %2003 = vmatprep.subr.mxu0 0.0
    %2004 = vmatpush2.msra.mxu0 0.0
    %2005 = vmatprep.subr.mxu0 0.0
    %2006 = vmatpush2.msra.mxu0 0.0
    %2007 = vmatprep.subr.mxu0 0.0
    %2008 = vmatpush2.msra.mxu0 0.0
    %2009 = vmatprep.subr.mxu0 0.0
    %2010 = vmatpush2.msra.mxu0 0.0
    %2011 = vmatprep.subr.mxu0 0.0
    %2012 = vmatpush2.msra.mxu0 0.0
    %2013 = vmatprep.subr.mxu0 0.0
    %2014 = vmatpush2.msra.mxu0 0.0
    %2015 = vmatprep.subr.mxu0 0.0
    %2016 = vmatpush2.msra.mxu0 0.0
    %2017 = vmatprep.subr.mxu0 0.0
    %2018 = vmatpush2.msra.mxu0 0.0
    %2019 = vmatprep.subr.mxu0 0.0
    %2020 = vmatpush2.msra.mxu0 0.0
    %2021 = vmatprep.subr.mxu0 0.0
    %2022 = vmatpush2.msra.mxu0 0.0
    %2023 = vmatprep.subr.mxu0 0.0
    %2024 = vmatpush2.msra.mxu0 0.0
    %2025 = vmatprep.subr.mxu0 0.0
    %2026 = vmatpush2.msra.mxu0 0.0
    %2027 = vmatprep.subr.mxu0 0.0
    %2028 = vmatpush2.msra.mxu0 0.0
    %2029 = vmatprep.mubr.f32.mxu0 0.0
    %2030 = vmatmul.mubr.f32.gmra.mxu0 %v1960
    %v2031 = vpop.f32.mrf.mxu0
    %v2032 = vadd.f32 0.0, %v2031
    %v2033 = vpop.f32.mrf.mxu0
    %2034 = vmatprep.mubr.f32.mxu0 0.0
    %2035 = vmatmul.mubr.f32.gmra.mxu0 %v1963
    %v2036 = vpop.f32.mrf.mxu0
    %v2037 = vadd.f32 0.0, %v2036
    %v2038 = vpop.f32.mrf.mxu0
    %2039 = vdwg.mxu0
    %v2040 = vmul.f32 %v698, %v1951
    %v2041 = vmul.f32 %v703, %v1958
    %v2042 = vsub.f32 %v2040, %v2041
    %v2043 = vmul.f32 %v712, %v2032
    %v2044 = vadd.f32 %v2042, %v2043
    %v2045 = vmul.f32 %v721, %v2037
    %v2046 = vsub.f32 %v2044, %v2045
    %v2047 = vmul.f32 %v698, %v1958
    %v2048 = vmul.f32 %v703, %v1951
    %v2049 = vadd.f32 %v2047, %v2048
    %v2050 = vmul.f32 %v712, %v2037
    %v2051 = vadd.f32 %v2049, %v2050
    %v2052 = vmul.f32 %v721, %v2032
    %v2053 = vadd.f32 %v2051, %v2052
    %2054 = vst.msk [vmem:[#allocation10] sm:$0xff] %vm80, %v2046
    %2055 = vst.msk [vmem:[#allocation10 + $0x8] sm:$0xff] %vm80, %v2053
    // Predicated region
    $region38: #{tpu_custom_call.1} parent=1 // pred_check
      _
    $region39: #{tpu_custom_call.1} parent=1 // pred_check_branch
      %2057 = sbr.rel (0) target = $region41
    $region40: #{tpu_custom_call.1} parent=1 // pred_region
      %s2059 = ssub.s32 256, 256
      %2060 = vsyncadd [#allocation4], %s2059
      %s2061 = sshll.u32 [#allocation10], 4
      %s2062 = int_to_ptr.vmem [resolvable:$true] %s2061
      %2067 = dma.vmem_to_hbm [thread:$0]  %s2062, 256, %s5, [#allocation4], 128, 128, 8
    $region41: #{tpu_custom_call.1} parent=1 // pred_fallthru
      _
    // Predicated region
    $region42: #{tpu_custom_call.1} parent=1 // pred_check
      _
    $region43: #{tpu_custom_call.1} parent=1 // pred_check_branch
      %2069 = sbr.rel (0) target = $region45
    $region44: #{tpu_custom_call.1} parent=1 // pred_region
      %2070 = dma.done [#allocation4], 256
    $region45: #{tpu_custom_call.1} parent=1 // pred_fallthru
      _
    %2071 = vsyncpa [#allocation3], 1
    %2072 = vsyncpa [#allocation6], 1
    %2073 = vsyncpa [#allocation9], 1
    %2074 = vsyncpa [#allocation4], 1

</llo_original>
